<compile_context>
chip_gen: v7x
topology: tpu7x:2x2x1
jax: 0.10.0
libtpu: 0.0.40
codegen_flags: <defaults>
</compile_context>

<pallas_src>
import math

import jax
import jax.numpy as jnp
from jax import lax
from jax.experimental import pallas as pl
from jax.experimental.pallas import tpu as pltpu

EPS = 1e-5  # nn.GroupNorm default eps


# --------------------------------- tiling / VMEM helpers -----------------------------------
def _vmem_budget_bytes():
    cap = 64 * 1024 * 1024  # conservative default (v7x per-TC VMEM)
    try:
        info = pltpu.get_tpu_info()
        cap = int(getattr(info, "vmem_capacity_bytes", cap))
    except Exception:
        pass
    # ~100 MiB on v5e/v6e (128 MiB physical), ~48 MiB on v7x (64 MiB physical).
    return min(100 * 1024 * 1024, (cap * 3) // 4)


def _pick_tile(total, target):
    """Largest multiple-of-128 divisor of `total` that is <= target; else full extent."""
    best = None
    t = 128
    while t <= min(total, target):
        if total % t == 0:
            best = t
        t += 128
    return best if best is not None else total


# ------------------ kernel 1: GroupNorm(32, C) + 1x1 qkv conv (per batch) ------------------
def _norm_qkv_kernel(x_ref, a_ref, gamma_ref, beta_ref,
                     wq_ref, wk_ref, wv_ref, bq_ref, bk_ref, bv_ref,
                     q_ref, k_ref, v_ref):
    x = x_ref[0].astype(jnp.float32)                       # (C, HW)
    C = x.shape[0]

    # Group statistics: per-channel lane reductions (XLU), stacked into a (C,2) operand via a
    # broadcasted-iota select, then ONE group-combine matmul.  a_ref is the same-group
    # indicator scaled by 1/(group_size*HW), so A @ [sum x, sum x^2] gives per-channel group
    # mean and group E[x^2] directly.
    s1 = jnp.sum(x, axis=1, keepdims=True)                 # (C, 1)
    s2 = jnp.sum(x * x, axis=1, keepdims=True)             # (C, 1)
    col = lax.broadcasted_iota(jnp.int32, (C, 2), 1)
    s12 = jnp.where(col == 0, s1, s2)                      # (C, 2)  [s1 | s2]
    stats = jnp.dot(a_ref[...], s12, preferred_element_type=jnp.float32)   # (C, 2)
    mu = stats[:, 0:1]
    var = stats[:, 1:2] - mu * mu

    xn = ((x - mu) * (lax.rsqrt(var + EPS) * gamma_ref[...]) + beta_ref[...]
          ).astype(jnp.bfloat16)                           # (C, HW) bf16 MXU operand

    # 1x1 conv over NCHW == channel matmul.  Three separate (C,C)@(C,HW) dots; each result is
    # cast + stored immediately so no (3C,HW) f32 intermediate ever exists.
    qscale = jnp.float32(1.0 / math.sqrt(C))               # softmax scale folded into Q
    q = jnp.dot(wq_ref[...], xn, preferred_element_type=jnp.float32) + bq_ref[...]
    q_ref[0] = (q * qscale).astype(q_ref.dtype)
    k = jnp.dot(wk_ref[...], xn, preferred_element_type=jnp.float32) + bk_ref[...]
    k_ref[0] = k.astype(k_ref.dtype)
    v = jnp.dot(wv_ref[...], xn, preferred_element_type=jnp.float32) + bv_ref[...]
    v_ref[0] = v.astype(v_ref.dtype)


# --------- kernel 2a: attention with per-batch VMEM-resident K/V + out conv + residual ------
def _attn_out_resident_kernel(qr_ref, k_ref, vr_ref, x_ref, wout_ref, bout_ref, y_ref):
    q = qr_ref[0]                                          # (TQ, C)  bf16, pre-scaled by 1/sqrt(C)
    s = jnp.dot(q, k_ref[0], preferred_element_type=jnp.float32)          # (TQ, HW)
    m = jnp.max(s, axis=-1, keepdims=True)
    p = jnp.exp(s - m)
    l = jnp.sum(p, axis=-1, keepdims=True)
    o = jnp.dot(p.astype(jnp.bfloat16), vr_ref[0],
                preferred_element_type=jnp.float32)                        # (TQ, C)
    o = o * pl.reciprocal(l, approx=True)
    # 1x1 out-conv producing lane-dense (C, TQ):  y[c, p] = sum_k Wout[c, k] * o[p, k]
    y = lax.dot_general(wout_ref[...], o.astype(jnp.bfloat16),
                        (((1,), (1,)), ((), ())),
                        preferred_element_type=jnp.float32)                # (C, TQ)
    y_ref[0] = (y + bout_ref[...] + x_ref[0].astype(jnp.float32)).astype(y_ref.dtype)


# --------- kernel 2b: streaming flash attention + out conv + residual (large C*HW) ----------
def _attn_out_stream_kernel(qr_ref, k_ref, vr_ref, x_ref, wout_ref, bout_ref,
                            y_ref, m_ref, l_ref, acc_ref):
    kv = pl.program_id(2)

    @pl.when(kv == 0)
    def _init():
        m_ref[...] = jnp.full(m_ref.shape, -jnp.inf, dtype=m_ref.dtype)
        l_ref[...] = jnp.zeros(l_ref.shape, dtype=l_ref.dtype)
        acc_ref[...] = jnp.zeros(acc_ref.shape, dtype=acc_ref.dtype)

    # Q is already scaled by 1/sqrt(C) in kernel 1 -> no per-step score multiply.
    s = jnp.dot(qr_ref[0], k_ref[0], preferred_element_type=jnp.float32)   # (TQ, TKV)
    m_prev = m_ref[...]
    m_new = jnp.maximum(m_prev, jnp.max(s, axis=-1, keepdims=True))
    alpha = jnp.exp(m_prev - m_new)
    p = jnp.exp(s - m_new)
    l_ref[...] = alpha * l_ref[...] + jnp.sum(p, axis=-1, keepdims=True)
    acc_ref[...] = alpha * acc_ref[...] + jnp.dot(
        p.astype(jnp.bfloat16), vr_ref[0], preferred_element_type=jnp.float32)  # (TQ, C)
    m_ref[...] = m_new

    @pl.when(kv == pl.num_programs(2) - 1)
    def _finalize():
        o = acc_ref[...] * pl.reciprocal(l_ref[...], approx=True)               # (TQ, C)
        y = lax.dot_general(wout_ref[...], o.astype(jnp.bfloat16),
                            (((1,), (1,)), ((), ())),
                            preferred_element_type=jnp.float32)                 # (C, TQ)
        y_ref[0] = (y + bout_ref[...] + x_ref[0].astype(jnp.float32)).astype(y_ref.dtype)


# ----------------------------------------- wrapper -----------------------------------------
def attention_block(x, params, *, tq=256, tkv=256):
    B, C, H, W = x.shape
    HW = H * W
    assert C % 32 == 0, "GroupNorm(32, C) requires C % 32 == 0"
    g = C // 32

    budget = _vmem_budget_bytes()
    tq = _pick_tile(HW, tq)
    tkv = _pick_tile(HW, tkv)
    nq = HW // tq

    # Same-group indicator scaled so that (A @ per-channel-sum) == group mean per channel.
    groups = jnp.arange(C) // g
    A = (groups[:, None] == groups[None, :]).astype(jnp.float32) / float(g * HW)

    x_flat = x.reshape(B, C, HW)
    wq = params["wqkv"][:C].astype(jnp.bfloat16)
    wk = params["wqkv"][C:2 * C].astype(jnp.bfloat16)
    wv = params["wqkv"][2 * C:].astype(jnp.bfloat16)
    bq = params["bqkv"][:C].reshape(C, 1)
    bk = params["bqkv"][C:2 * C].reshape(C, 1)
    bv = params["bqkv"][2 * C:].reshape(C, 1)
    wout16 = params["wout"].astype(jnp.bfloat16)
    bout = params["bout"].reshape(C, 1)

    q, k, v = pl.pallas_call(
        _norm_qkv_kernel,
        out_shape=tuple(jax.ShapeDtypeStruct((B, C, HW), jnp.bfloat16) for _ in range(3)),
        grid_spec=pltpu.PrefetchScalarGridSpec(
            num_scalar_prefetch=0,
            grid=(B,),
            in_specs=[
                pl.BlockSpec((1, C, HW), lambda b: (b, 0, 0)),   # x (per batch)
                pl.BlockSpec((C, C), lambda b: (0, 0)),          # group-combine matrix
                pl.BlockSpec((C, 1), lambda b: (0, 0)),          # gamma
                pl.BlockSpec((C, 1), lambda b: (0, 0)),          # beta
                pl.BlockSpec((C, C), lambda b: (0, 0)),          # wq
                pl.BlockSpec((C, C), lambda b: (0, 0)),          # wk
                pl.BlockSpec((C, C), lambda b: (0, 0)),          # wv
                pl.BlockSpec((C, 1), lambda b: (0, 0)),          # bq
                pl.BlockSpec((C, 1), lambda b: (0, 0)),          # bk
                pl.BlockSpec((C, 1), lambda b: (0, 0)),          # bv
            ],
            out_specs=[pl.BlockSpec((1, C, HW), lambda b: (b, 0, 0)) for _ in range(3)],
        ),
        compiler_params=pltpu.CompilerParams(
            dimension_semantics=("parallel",),
            vmem_limit_bytes=budget),
    )(x_flat, A, params["gamma"].reshape(C, 1), params["beta"].reshape(C, 1),
      wq, wk, wv, bq, bk, bv)

    # PyTorch `.reshape(b, h*w, c)` of contiguous (b, c, h, w) data is a row-major reshape,
    # NOT a transpose.  Only this bf16 Q/V relayout touches HBM between the two kernels.
    qr = q.reshape(B, HW, C)
    vr = v.reshape(B, HW, C)

    # K/V residency gate: K + V bf16 (double-buffered) + f32 score/exp temporaries + tiles.
    resident_need = (8 * C * HW          # K + V bf16, x2 buffers
                     + 8 * tq * HW       # scores + exp(scores) f32
                     + 16 * tq * C       # q/acc/out tiles
                     + 4 * C * C         # wout
                     + (2 << 20))        # slack
    kv_resident = resident_need <= int(0.9 * budget)

    if kv_resident:
        # K/V blocks keep the same block index across qi -> DMA'd once per batch.
        y_chw = pl.pallas_call(
            _attn_out_resident_kernel,
            out_shape=jax.ShapeDtypeStruct((B, C, HW), x.dtype),
            grid_spec=pltpu.PrefetchScalarGridSpec(
                num_scalar_prefetch=0,
                grid=(B, nq),
                in_specs=[
                    pl.BlockSpec((1, tq, C), lambda b, qi: (b, qi, 0)),   # Q rows
                    pl.BlockSpec((1, C, HW), lambda b, qi: (b, 0, 0)),    # K (resident)
                    pl.BlockSpec((1, HW, C), lambda b, qi: (b, 0, 0)),    # V rows (resident)
                    pl.BlockSpec((1, C, tq), lambda b, qi: (b, 0, qi)),   # residual x
                    pl.BlockSpec((C, C), lambda b, qi: (0, 0)),           # Wout
                    pl.BlockSpec((C, 1), lambda b, qi: (0, 0)),           # bout
                ],
                out_specs=pl.BlockSpec((1, tq if False else C, tq)[-2:],  # (C, tq) lane-dense
                                       lambda b, qi: (b, 0, qi)) if False else
                          pl.BlockSpec((1, C, tq), lambda b, qi: (b, 0, qi)),
            ),
            compiler_params=pltpu.CompilerParams(
                dimension_semantics=("parallel", "parallel"),
                vmem_limit_bytes=budget),
        )(qr, k, vr, x_flat, wout16, bout)
    else:
        nkv = HW // tkv
        # NOTE: if profiling shows exposed K/V DMA here, pipeline_mode=pl.Buffered(3) on the
        # K/V BlockSpecs is a cheap follow-up (skip on v7x when VMEM headroom is tight).
        y_chw = pl.pallas_call(
            _attn_out_stream_kernel,
            out_shape=jax.ShapeDtypeStruct((B, C, HW), x.dtype),
            grid_spec=pltpu.PrefetchScalarGridSpec(
                num_scalar_prefetch=0,
                grid=(B, nq, nkv),
                in_specs=[
                    pl.BlockSpec((1, tq, C), lambda b, qi, kv: (b, qi, 0)),   # Q tile (resident over kv)
                    pl.BlockSpec((1, C, tkv), lambda b, qi, kv: (b, 0, kv)),  # K columns
                    pl.BlockSpec((1, tkv, C), lambda b, qi, kv: (b, kv, 0)),  # V rows
                    pl.BlockSpec((1, C, tq), lambda b, qi, kv: (b, 0, qi)),   # residual x
                    pl.BlockSpec((C, C), lambda b, qi, kv: (0, 0)),           # Wout
                    pl.BlockSpec((C, 1), lambda b, qi, kv: (0, 0)),           # bout
                ],
                out_specs=pl.BlockSpec((1, C, tq), lambda b, qi, kv: (b, 0, qi)),
                scratch_shapes=[
                    pltpu.VMEM((tq, 1), jnp.float32),   # m
                    pltpu.VMEM((tq, 1), jnp.float32),   # l
                    pltpu.VMEM((tq, C), jnp.float32),   # acc
                ],
            ),
            compiler_params=pltpu.CompilerParams(
                dimension_semantics=("parallel", "parallel", "arbitrary"),
                vmem_limit_bytes=budget),
        )(qr, k, vr, x_flat, wout16, bout)

    # (B, C, HW) -> NCHW is a pure reshape (no transpose).
    return y_chw.reshape(B, C, H, W)


# ----------------------------------- deterministic params ----------------------------------
def init_params(key, C):
    k1, k2, k3, k4, k5, k6 = jax.random.split(key, 6)
    scale = 1.0 / jnp.sqrt(jnp.float32(C))
    return dict(
        gamma=1.0 + 0.1 * jax.random.normal(k1, (C,), jnp.float32),   # GroupNorm weight (C,)
        beta=0.1 * jax.random.normal(k2, (C,), jnp.float32),          # GroupNorm bias   (C,)
        wqkv=scale * jax.random.normal(k3, (3 * C, C), jnp.float32),  # Conv2d 1x1 (3C, C, 1, 1)
        bqkv=0.01 * jax.random.normal(k4, (3 * C,), jnp.float32),
        wout=scale * jax.random.normal(k5, (C, C), jnp.float32),      # Conv2d 1x1 (C, C, 1, 1)
        bout=0.01 * jax.random.normal(k6, (C,), jnp.float32),
    )


# ------------------------------------ pure-JAX reference -----------------------------------
def ref_forward(x, params):
    B, C, H, W = x.shape
    g = C // 32
    hp = jax.lax.Precision.HIGHEST
    xr = x.reshape(B, 32, g, H, W).astype(jnp.float32)
    mu = xr.mean(axis=(2, 3, 4), keepdims=True)
    var = ((xr - mu) ** 2).mean(axis=(2, 3, 4), keepdims=True)
    xn = ((xr - mu) / jnp.sqrt(var + EPS)).reshape(B, C, H, W)
    xn = xn * params["gamma"][None, :, None, None] + params["beta"][None, :, None, None]
    qkv = jnp.einsum("oc,bchw->bohw", params["wqkv"], xn, precision=hp) \
        + params["bqkv"][None, :, None, None]
    Q, K, V = qkv[:, :C], qkv[:, C:2 * C], qkv[:, 2 * C:]
    Qr = Q.reshape(B, H * W, C)
    Kr = K.reshape(B, C, H * W)
    Vr = V.reshape(B, H * W, C)
    s = jnp.einsum("bpc,bcq->bpq", Qr, Kr, precision=hp) / jnp.sqrt(jnp.float32(C))
    attn = jax.nn.softmax(s, axis=-1)
    o = jnp.einsum("bpq,bqc->bpc", attn, Vr, precision=hp)
    o_nchw = o.reshape(B, H, W, C).transpose(0, 3, 1, 2)
    y = jnp.einsum("oc,bchw->bohw", params["wout"], o_nchw, precision=hp) \
        + params["bout"][None, :, None, None]
    return y + x


if __name__ == "__main__":
    # GroupNorm(32, C) requires C % 32 == 0 -> smallest sensible C is 32.
    B, C, H, W = 2, 32, 16, 16
    key = jax.random.PRNGKey(0)
    kx, kp = jax.random.split(key)
    x = jax.random.normal(kx, (B, C, H, W), jnp.float32)
    params = init_params(kp, C)

    y = attention_block(x, params)
    y = jax.block_until_ready(y)

    y_ref = ref_forward(x, params)
    assert y.shape == x.shape
    diff = jnp.abs(y - y_ref)
    max_err = float(jnp.max(diff))
    rel_l2 = float(jnp.linalg.norm(y - y_ref) / jnp.linalg.norm(y_ref))
    # Tolerance accounts for bf16 MXU operands (f32 accumulation) vs the f32 HIGHEST reference.
    if not (rel_l2 < 2e-2 and max_err < 1e-1):
        raise AssertionError(
            f"Pallas output mismatch vs reference: rel_l2={rel_l2}, max_abs={max_err}")
    print("KERNEL_OK")
</pallas_src>

<mosaic_0001>
module attributes {stable_mosaic.version = 11 : i64} {
  func.func @_norm_qkv_kernel(%arg0: i32, %arg1: memref<1x32x256xf32, #tpu.memory_space<vmem>>, %arg2: memref<32x32xf32, #tpu.memory_space<vmem>>, %arg3: memref<32x1xf32, #tpu.memory_space<vmem>>, %arg4: memref<32x1xf32, #tpu.memory_space<vmem>>, %arg5: memref<32x32xbf16, #tpu.memory_space<vmem>>, %arg6: memref<32x32xbf16, #tpu.memory_space<vmem>>, %arg7: memref<32x32xbf16, #tpu.memory_space<vmem>>, %arg8: memref<32x1xf32, #tpu.memory_space<vmem>>, %arg9: memref<32x1xf32, #tpu.memory_space<vmem>>, %arg10: memref<32x1xf32, #tpu.memory_space<vmem>>, %arg11: memref<1x32x256xbf16, #tpu.memory_space<vmem>>, %arg12: memref<1x32x256xbf16, #tpu.memory_space<vmem>>, %arg13: memref<1x32x256xbf16, #tpu.memory_space<vmem>>) attributes {dimension_semantics = [#tpu.dimension_semantics<parallel>], iteration_bounds = array<i64: 2>, scalar_prefetch = 0 : i64, scratch_operands = 0 : i64, tpu.core_type = #tpu.core_type<tc>, window_params = [{transform_indices = @transform_0, window_bounds = array<i64: 1, 32, 256>}, {pipeline_mode = #tpu.pipeline_mode<synchronous>, transform_indices = @transform_1, window_bounds = array<i64: 32, 32>}, {pipeline_mode = #tpu.pipeline_mode<synchronous>, transform_indices = @transform_2, window_bounds = array<i64: 32, 1>}, {pipeline_mode = #tpu.pipeline_mode<synchronous>, transform_indices = @transform_3, window_bounds = array<i64: 32, 1>}, {pipeline_mode = #tpu.pipeline_mode<synchronous>, transform_indices = @transform_4, window_bounds = array<i64: 32, 32>}, {pipeline_mode = #tpu.pipeline_mode<synchronous>, transform_indices = @transform_5, window_bounds = array<i64: 32, 32>}, {pipeline_mode = #tpu.pipeline_mode<synchronous>, transform_indices = @transform_6, window_bounds = array<i64: 32, 32>}, {pipeline_mode = #tpu.pipeline_mode<synchronous>, transform_indices = @transform_7, window_bounds = array<i64: 32, 1>}, {pipeline_mode = #tpu.pipeline_mode<synchronous>, transform_indices = @transform_8, window_bounds = array<i64: 32, 1>}, {pipeline_mode = #tpu.pipeline_mode<synchronous>, transform_indices = @transform_9, window_bounds = array<i64: 32, 1>}, {transform_indices = @transform_10, window_bounds = array<i64: 1, 32, 256>}, {transform_indices = @transform_11, window_bounds = array<i64: 1, 32, 256>}, {transform_indices = @transform_12, window_bounds = array<i64: 1, 32, 256>}]} {
    %c0 = arith.constant 0 : index
    %c0_0 = arith.constant 0 : index
    %c0_1 = arith.constant 0 : index
    %0 = vector.load %arg1[%c0, %c0_0, %c0_1] : memref<1x32x256xf32, #tpu.memory_space<vmem>>, vector<1x32x256xf32>
    %1 = vector.shape_cast %0 : vector<1x32x256xf32> to vector<32x256xf32>
    %cst = arith.constant dense<0.000000e+00> : vector<32xf32>
    %2 = vector.multi_reduction <add>, %1, %cst [1] : vector<32x256xf32> to vector<32xf32>
    %3 = vector.shape_cast %2 : vector<32xf32> to vector<32x1xf32>
    %4 = arith.mulf %1, %1 : vector<32x256xf32>
    %cst_2 = arith.constant dense<0.000000e+00> : vector<32xf32>
    %5 = vector.multi_reduction <add>, %4, %cst_2 [1] : vector<32x256xf32> to vector<32xf32>
    %6 = vector.shape_cast %5 : vector<32xf32> to vector<32x1xf32>
    %7 = tpu.iota {dimensions = array<i32: 1>} : vector<32x2xi32>
    %c0_i32 = arith.constant 0 : i32
    %8 = vector.broadcast %c0_i32 : i32 to vector<32x2xi32>
    %9 = arith.cmpi eq, %7, %8 : vector<32x2xi32>
    %10 = vector.shape_cast %3 : vector<32x1xf32> to vector<32x1xf32>
    %11 = vector.broadcast %10 : vector<32x1xf32> to vector<32x2xf32>
    %12 = vector.shape_cast %6 : vector<32x1xf32> to vector<32x1xf32>
    %13 = vector.broadcast %12 : vector<32x1xf32> to vector<32x2xf32>
    %14 = arith.select %9, %11, %13 : vector<32x2xi1>, vector<32x2xf32>
    %c0_3 = arith.constant 0 : index
    %c0_4 = arith.constant 0 : index
    %15 = vector.load %arg2[%c0_3, %c0_4] : memref<32x32xf32, #tpu.memory_space<vmem>>, vector<32x32xf32>
    %cst_5 = arith.constant dense<0.000000e+00> : vector<32x2xf32>
    %16 = tpu.matmul %15, %14, %cst_5 {dimension_numbers = #tpu.dot_dimension_numbers<[1], [0], [0], [1], [0, 0, 1, 1], [], []>} : vector<32x32xf32>, vector<32x2xf32>, vector<32x2xf32> -> vector<32x2xf32>
    %17 = vector.extract_strided_slice %16 {offsets = [0, 0], sizes = [32, 1], strides = [1, 1]} : vector<32x2xf32> to vector<32x1xf32>
    %18 = vector.extract_strided_slice %16 {offsets = [0, 1], sizes = [32, 1], strides = [1, 1]} : vector<32x2xf32> to vector<32x1xf32>
    %19 = arith.mulf %17, %17 : vector<32x1xf32>
    %20 = arith.subf %18, %19 : vector<32x1xf32>
    %21 = vector.broadcast %17 : vector<32x1xf32> to vector<32x256xf32>
    %22 = arith.subf %1, %21 : vector<32x256xf32>
    %cst_6 = arith.constant 9.99999974E-6 : f32
    %23 = vector.broadcast %cst_6 : f32 to vector<32x1xf32>
    %24 = arith.addf %20, %23 : vector<32x1xf32>
    %25 = math.rsqrt %24 : vector<32x1xf32>
    %c0_7 = arith.constant 0 : index
    %c0_8 = arith.constant 0 : index
    %26 = vector.load %arg3[%c0_7, %c0_8] : memref<32x1xf32, #tpu.memory_space<vmem>>, vector<32x1xf32>
    %27 = arith.mulf %25, %26 : vector<32x1xf32>
    %28 = vector.broadcast %27 : vector<32x1xf32> to vector<32x256xf32>
    %29 = arith.mulf %22, %28 : vector<32x256xf32>
    %c0_9 = arith.constant 0 : index
    %c0_10 = arith.constant 0 : index
    %30 = vector.load %arg4[%c0_9, %c0_10] : memref<32x1xf32, #tpu.memory_space<vmem>>, vector<32x1xf32>
    %31 = vector.broadcast %30 : vector<32x1xf32> to vector<32x256xf32>
    %32 = arith.addf %29, %31 : vector<32x256xf32>
    %33 = arith.truncf %32 : vector<32x256xf32> to vector<32x256xbf16>
    %c0_11 = arith.constant 0 : index
    %c0_12 = arith.constant 0 : index
    %34 = vector.load %arg5[%c0_11, %c0_12] : memref<32x32xbf16, #tpu.memory_space<vmem>>, vector<32x32xbf16>
    %cst_13 = arith.constant dense<0.000000e+00> : vector<32x256xf32>
    %35 = tpu.matmul %34, %33, %cst_13 {dimension_numbers = #tpu.dot_dimension_numbers<[1], [0], [0], [1], [0, 0, 1, 1], [], []>} : vector<32x32xbf16>, vector<32x256xbf16>, vector<32x256xf32> -> vector<32x256xf32>
    %c0_14 = arith.constant 0 : index
    %c0_15 = arith.constant 0 : index
    %36 = vector.load %arg8[%c0_14, %c0_15] : memref<32x1xf32, #tpu.memory_space<vmem>>, vector<32x1xf32>
    %37 = vector.broadcast %36 : vector<32x1xf32> to vector<32x256xf32>
    %38 = arith.addf %35, %37 : vector<32x256xf32>
    %cst_16 = arith.constant 0.176776692 : f32
    %39 = vector.broadcast %cst_16 : f32 to vector<32x256xf32>
    %40 = arith.mulf %38, %39 : vector<32x256xf32>
    %41 = arith.truncf %40 : vector<32x256xf32> to vector<32x256xbf16>
    %c0_17 = arith.constant 0 : index
    %c0_18 = arith.constant 0 : index
    %c0_19 = arith.constant 0 : index
    %42 = vector.load %arg11[%c0_17, %c0_18, %c0_19] : memref<1x32x256xbf16, #tpu.memory_space<vmem>>, vector<1x32x256xbf16>
    %43 = vector.shape_cast %42 : vector<1x32x256xbf16> to vector<32x256xbf16>
    %44 = vector.shape_cast %41 : vector<32x256xbf16> to vector<1x32x256xbf16>
    tpu.vector_store %arg11[%c0_17, %c0_18, %c0_19], %44 {strides = array<i32>} : memref<1x32x256xbf16, #tpu.memory_space<vmem>>, vector<1x32x256xbf16>,
    %c0_20 = arith.constant 0 : index
    %c0_21 = arith.constant 0 : index
    %45 = vector.load %arg6[%c0_20, %c0_21] : memref<32x32xbf16, #tpu.memory_space<vmem>>, vector<32x32xbf16>
    %cst_22 = arith.constant dense<0.000000e+00> : vector<32x256xf32>
    %46 = tpu.matmul %45, %33, %cst_22 {dimension_numbers = #tpu.dot_dimension_numbers<[1], [0], [0], [1], [0, 0, 1, 1], [], []>} : vector<32x32xbf16>, vector<32x256xbf16>, vector<32x256xf32> -> vector<32x256xf32>
    %c0_23 = arith.constant 0 : index
    %c0_24 = arith.constant 0 : index
    %47 = vector.load %arg9[%c0_23, %c0_24] : memref<32x1xf32, #tpu.memory_space<vmem>>, vector<32x1xf32>
    %48 = vector.broadcast %47 : vector<32x1xf32> to vector<32x256xf32>
    %49 = arith.addf %46, %48 : vector<32x256xf32>
    %50 = arith.truncf %49 : vector<32x256xf32> to vector<32x256xbf16>
    %c0_25 = arith.constant 0 : index
    %c0_26 = arith.constant 0 : index
    %c0_27 = arith.constant 0 : index
    %51 = vector.load %arg12[%c0_25, %c0_26, %c0_27] : memref<1x32x256xbf16, #tpu.memory_space<vmem>>, vector<1x32x256xbf16>
    %52 = vector.shape_cast %51 : vector<1x32x256xbf16> to vector<32x256xbf16>
    %53 = vector.shape_cast %50 : vector<32x256xbf16> to vector<1x32x256xbf16>
    tpu.vector_store %arg12[%c0_25, %c0_26, %c0_27], %53 {strides = array<i32>} : memref<1x32x256xbf16, #tpu.memory_space<vmem>>, vector<1x32x256xbf16>,
    %c0_28 = arith.constant 0 : index
    %c0_29 = arith.constant 0 : index
    %54 = vector.load %arg7[%c0_28, %c0_29] : memref<32x32xbf16, #tpu.memory_space<vmem>>, vector<32x32xbf16>
    %cst_30 = arith.constant dense<0.000000e+00> : vector<32x256xf32>
    %55 = tpu.matmul %54, %33, %cst_30 {dimension_numbers = #tpu.dot_dimension_numbers<[1], [0], [0], [1], [0, 0, 1, 1], [], []>} : vector<32x32xbf16>, vector<32x256xbf16>, vector<32x256xf32> -> vector<32x256xf32>
    %c0_31 = arith.constant 0 : index
    %c0_32 = arith.constant 0 : index
    %56 = vector.load %arg10[%c0_31, %c0_32] : memref<32x1xf32, #tpu.memory_space<vmem>>, vector<32x1xf32>
    %57 = vector.broadcast %56 : vector<32x1xf32> to vector<32x256xf32>
    %58 = arith.addf %55, %57 : vector<32x256xf32>
    %59 = arith.truncf %58 : vector<32x256xf32> to vector<32x256xbf16>
    %c0_33 = arith.constant 0 : index
    %c0_34 = arith.constant 0 : index
    %c0_35 = arith.constant 0 : index
    %60 = vector.load %arg13[%c0_33, %c0_34, %c0_35] : memref<1x32x256xbf16, #tpu.memory_space<vmem>>, vector<1x32x256xbf16>
    %61 = vector.shape_cast %60 : vector<1x32x256xbf16> to vector<32x256xbf16>
    %62 = vector.shape_cast %59 : vector<32x256xbf16> to vector<1x32x256xbf16>
    tpu.vector_store %arg13[%c0_33, %c0_34, %c0_35], %62 {strides = array<i32>} : memref<1x32x256xbf16, #tpu.memory_space<vmem>>, vector<1x32x256xbf16>,
    return
  }
  func.func @transform_0(%arg0: i32) -> (i32, i32, i32) {
    %c0_i32 = arith.constant 0 : i32
    %c0_i32_0 = arith.constant 0 : i32
    %c0_i32_1 = arith.constant 0 : i32
    return %arg0, %c0_i32, %c0_i32_0 : i32, i32, i32
  }
  func.func @transform_1(%arg0: i32) -> (i32, i32) {
    %c0_i32 = arith.constant 0 : i32
    %c0_i32_0 = arith.constant 0 : i32
    %c0_i32_1 = arith.constant 0 : i32
    return %c0_i32, %c0_i32_0 : i32, i32
  }
  func.func @transform_2(%arg0: i32) -> (i32, i32) {
    %c0_i32 = arith.constant 0 : i32
    %c0_i32_0 = arith.constant 0 : i32
    %c0_i32_1 = arith.constant 0 : i32
    return %c0_i32, %c0_i32_0 : i32, i32
  }
  func.func @transform_3(%arg0: i32) -> (i32, i32) {
    %c0_i32 = arith.constant 0 : i32
    %c0_i32_0 = arith.constant 0 : i32
    %c0_i32_1 = arith.constant 0 : i32
    return %c0_i32, %c0_i32_0 : i32, i32
  }
  func.func @transform_4(%arg0: i32) -> (i32, i32) {
    %c0_i32 = arith.constant 0 : i32
    %c0_i32_0 = arith.constant 0 : i32
    %c0_i32_1 = arith.constant 0 : i32
    return %c0_i32, %c0_i32_0 : i32, i32
  }
  func.func @transform_5(%arg0: i32) -> (i32, i32) {
    %c0_i32 = arith.constant 0 : i32
    %c0_i32_0 = arith.constant 0 : i32
    %c0_i32_1 = arith.constant 0 : i32
    return %c0_i32, %c0_i32_0 : i32, i32
  }
  func.func @transform_6(%arg0: i32) -> (i32, i32) {
    %c0_i32 = arith.constant 0 : i32
    %c0_i32_0 = arith.constant 0 : i32
    %c0_i32_1 = arith.constant 0 : i32
    return %c0_i32, %c0_i32_0 : i32, i32
  }
  func.func @transform_7(%arg0: i32) -> (i32, i32) {
    %c0_i32 = arith.constant 0 : i32
    %c0_i32_0 = arith.constant 0 : i32
    %c0_i32_1 = arith.constant 0 : i32
    return %c0_i32, %c0_i32_0 : i32, i32
  }
  func.func @transform_8(%arg0: i32) -> (i32, i32) {
    %c0_i32 = arith.constant 0 : i32
    %c0_i32_0 = arith.constant 0 : i32
    %c0_i32_1 = arith.constant 0 : i32
    return %c0_i32, %c0_i32_0 : i32, i32
  }
  func.func @transform_9(%arg0: i32) -> (i32, i32) {
    %c0_i32 = arith.constant 0 : i32
    %c0_i32_0 = arith.constant 0 : i32
    %c0_i32_1 = arith.constant 0 : i32
    return %c0_i32, %c0_i32_0 : i32, i32
  }
  func.func @transform_10(%arg0: i32) -> (i32, i32, i32) {
    %c0_i32 = arith.constant 0 : i32
    %c0_i32_0 = arith.constant 0 : i32
    %c0_i32_1 = arith.constant 0 : i32
    return %arg0, %c0_i32, %c0_i32_0 : i32, i32, i32
  }
  func.func @transform_11(%arg0: i32) -> (i32, i32, i32) {
    %c0_i32 = arith.constant 0 : i32
    %c0_i32_0 = arith.constant 0 : i32
    %c0_i32_1 = arith.constant 0 : i32
    return %arg0, %c0_i32, %c0_i32_0 : i32, i32, i32
  }
  func.func @transform_12(%arg0: i32) -> (i32, i32, i32) {
    %c0_i32 = arith.constant 0 : i32
    %c0_i32_0 = arith.constant 0 : i32
    %c0_i32_1 = arith.constant 0 : i32
    return %arg0, %c0_i32, %c0_i32_0 : i32, i32, i32
  }
}

</mosaic_0001>

<llo_original>
// kernel: tpu_custom_call.1
$region0: #{tpu_custom_call.1}
  #allocation0 [shape = 'u32[]', space=smem, size = 0x4, offset = 0x4, fixed_abs, tag = 'smem constant byte address 0x4 - core index']
  #allocation1 [shape = 'u32[144,128]{1,0:T(1,128)}', space=vmem, size = 0x12000, scoped, tag = 'internal scratch']
  %s0 = inlined_call_operand.vmem [shape: f32[2,32,256], index: 0, kind: input, shape index: {}]
  %s1 = inlined_call_operand.vmem [shape: f32[32,32], index: 1, kind: input, shape index: {}]
  %s2 = inlined_call_operand.vmem [shape: f32[32,1], index: 2, kind: input, shape index: {}]
  %s3 = inlined_call_operand.vmem [shape: f32[32,1], index: 3, kind: input, shape index: {}]
  %s4 = inlined_call_operand.vmem [shape: bf16[32,32], index: 4, kind: input, shape index: {}]
  %s5 = inlined_call_operand.hbm [shape: bf16[32,32], index: 5, kind: input, shape index: {}]
  %s6 = inlined_call_operand.hbm [shape: bf16[32,32], index: 6, kind: input, shape index: {}]
  %s7 = inlined_call_operand.vmem [shape: f32[32,1], index: 7, kind: input, shape index: {}]
  %s8 = inlined_call_operand.vmem [shape: f32[32,1], index: 8, kind: input, shape index: {}]
  %s9 = inlined_call_operand.vmem [shape: f32[32,1], index: 9, kind: input, shape index: {}]
  %s10 = inlined_call_operand.hbm [shape: bf16[2,32,256], index: 10, kind: output, shape index: {0}]
  %s11 = inlined_call_operand.hbm [shape: bf16[2,32,256], index: 11, kind: output, shape index: {1}]
  %s12 = inlined_call_operand.hbm [shape: bf16[2,32,256], index: 12, kind: output, shape index: {2}]
  %13 = xla_tuple %s10, %s11, %s12
  %s14 = sld [smem:[#allocation0]]
  $region97: #{tpu_custom_call.1} parent=0
    _
  %s16 = ssub.s32 1, %s14
  %s17 = scalar_select 0, %s16, %s14
  $region1: #{tpu_custom_call.1} parent=0
    #allocation2 [shape = 'u8[8192]{0}', space=vmem, size = 0x2000, scoped, tag = 'input window, operand 5, single buffered']
    #allocation3 [shape = 's32[2]{0}', space=sflag, size = 0x8, scoped, tag = 'scoped memory for tpu_custom_call.1']
    #allocation4 [shape = 's32[2]{0}', space=sflag, size = 0x8, scoped, tag = 'scoped memory for tpu_custom_call.1']
    #allocation5 [shape = 'u8[8192]{0}', space=vmem, size = 0x2000, scoped, tag = 'input window, operand 6, single buffered']
    #allocation6 [shape = 's32[1]{0}', space=sflag, size = 0x4, scoped, tag = 'scoped memory for tpu_custom_call.1']
    #allocation7 [shape = 'u8[32768]{0}', space=vmem, size = 0x8000, scoped, tag = 'output window, operand 0']
    #allocation8 [shape = 'u8[32768]{0}', space=vmem, size = 0x8000, scoped, tag = 'output window, operand 1']
    #allocation9 [shape = 's32[2]{0}', space=sflag, size = 0x8, scoped, tag = 'scoped memory for tpu_custom_call.1']
    #allocation10 [shape = 'u8[32768]{0}', space=vmem, size = 0x8000, scoped, tag = 'output window, operand 2']
    %18 = vsyncpa [#allocation3], 0
    %19 = vsyncpa [#allocation6], 0
    %20 = vsyncpa [#allocation4], 0
    %s21 = scalar_lea.sflag [#allocation4], 1
    %22 = vsyncpa %s21, 0
    %23 = vsyncpa [#allocation9], 0
    %s24 = scalar_lea.sflag [#allocation9], 1
    %25 = vsyncpa %s24, 0
    loop: start=0, step=1, limit=4
    $region2: #{tpu_custom_call.1} parent=1 // loop_pre_header
      _
    $region3: #{tpu_custom_call.1} parent=1 // loop_header
      %s27 = sphi 0, %s31
      %p28 = scmp.ge.s32.totalorder %s27, 4
      %s37 = sphi 0, %s39
      %s40 = sphi 0, %s37
      %s41 = sphi 0, %s40
      %s57 = sphi 0, %s41
      %s61 = sphi 0, %s61
      %s63 = sphi 0, %s61
      %s64 = sphi 0, %s63
      %s78 = sphi 0, %s64
      %s82 = sphi 0, %s82
      %s84 = sphi 0, %s82
      %s85 = sphi 0, %s84
      %s99 = sphi 0, %s85
      %s103 = sphi 0, %s103
      %s105 = sphi 0, %s103
      %s106 = sphi 0, %s105
      %s120 = sphi 0, %s106
      %s124 = sphi 0, %s124
      %s126 = sphi 0, %s124
      %s127 = sphi 0, %s126
      %s141 = sphi 0, %s127
      %s145 = sphi 0, %s145
      %s147 = sphi 0, %s145
      %s148 = sphi 0, %s147
      %s162 = sphi 0, %s148
      %s166 = sphi 0, %s166
      %s168 = sphi 0, %s166
      %s169 = sphi 0, %s168
      %s183 = sphi 0, %s169
      %s187 = sphi 0, %s187
      %s189 = sphi 0, %s187
      %s190 = sphi 0, %s189
      %s204 = sphi 0, %s190
      %s208 = sphi 0, %s208
      %s210 = sphi 0, %s208
      %s211 = sphi 0, %s210
      %s225 = sphi 0, %s211
      %s229 = sphi 0, %s229
      %s231 = sphi 0, %s229
      %s232 = sphi 0, %s231
      %s246 = sphi 0, %s232
      %s252 = sphi 0, %s254
      %s255 = sphi 0, %s252
      %s256 = sphi 0, %s255
      %s272 = sphi 0, %s256
      %s278 = sphi 0, %s280
      %s281 = sphi 0, %s278
      %s282 = sphi 0, %s281
      %s298 = sphi 0, %s282
      %s304 = sphi 0, %s306
      %s307 = sphi 0, %s304
      %s308 = sphi 0, %s307
      %s324 = sphi 0, %s308
    $region4: #{tpu_custom_call.1} parent=1 // loop_header_branch
      %30 = sbr.rel (%p28) target = $region8
    $region5: #{tpu_custom_call.1} parent=1 // loop_body
      %s32 = ssub.s32 %s27, 1
      %s33 = ssub.s32 %s27, 2
      %s34 = sadd.s32 %s27, 1
      %s35 = ssub.s32 %s27, %s34
      %p36 = scmp.eq.s32.totalorder %s35, 0
      %s38 = sadd.s32 %s37, 1
      %s39 = scalar_select %p36, %s37, %s38
      %p42 = pneg %p36
      %p43 = scmp.eq.s32.totalorder %s27, 1
      %p44 = por %p42, %p43
      %p45 = scmp.ne.s32.totalorder %s37, %s40
      %p46 = scmp.eq.s32.totalorder %s27, 0
      %p47 = por %p45, %p46
      %p48 = scmp.ne.s32.totalorder %s37, %s40
      %p49 = scmp.eq.s32.totalorder %s32, 1
      %p50 = por %p48, %p49
      %p51 = scmp.ne.s32.totalorder %s40, %s41
      %p52 = scmp.eq.s32.totalorder %s32, 0
      %p53 = por %p51, %p52
      %p54 = scmp.ne.s32.totalorder %s40, %s41
      %p55 = scmp.eq.s32.totalorder %s33, 1
      %p56 = por %p54, %p55
      %p58 = scmp.ne.s32.totalorder %s41, %s57
      %p59 = scmp.eq.s32.totalorder %s33, 0
      %p60 = por %p58, %p59
      %s62 = sadd.s32 %s61, 1
      %p65 = scmp.eq.s32.totalorder %s27, 1
      %p66 = scmp.ne.s32.totalorder %s61, %s63
      %p67 = scmp.eq.s32.totalorder %s27, 0
      %p68 = por %p66, %p67
      %p69 = scmp.ne.s32.totalorder %s61, %s63
      %p70 = scmp.eq.s32.totalorder %s32, 1
      %p71 = por %p69, %p70
      %p72 = scmp.ne.s32.totalorder %s63, %s64
      %p73 = scmp.eq.s32.totalorder %s32, 0
      %p74 = por %p72, %p73
      %p75 = scmp.ne.s32.totalorder %s63, %s64
      %p76 = scmp.eq.s32.totalorder %s33, 1
      %p77 = por %p75, %p76
      %p79 = scmp.ne.s32.totalorder %s64, %s78
      %p80 = scmp.eq.s32.totalorder %s33, 0
      %p81 = por %p79, %p80
      %s83 = sadd.s32 %s82, 1
      %p86 = scmp.eq.s32.totalorder %s27, 1
      %p87 = scmp.ne.s32.totalorder %s82, %s84
      %p88 = scmp.eq.s32.totalorder %s27, 0
      %p89 = por %p87, %p88
      %p90 = scmp.ne.s32.totalorder %s82, %s84
      %p91 = scmp.eq.s32.totalorder %s32, 1
      %p92 = por %p90, %p91
      %p93 = scmp.ne.s32.totalorder %s84, %s85
      %p94 = scmp.eq.s32.totalorder %s32, 0
      %p95 = por %p93, %p94
      %p96 = scmp.ne.s32.totalorder %s84, %s85
      %p97 = scmp.eq.s32.totalorder %s33, 1
      %p98 = por %p96, %p97
      %p100 = scmp.ne.s32.totalorder %s85, %s99
      %p101 = scmp.eq.s32.totalorder %s33, 0
      %p102 = por %p100, %p101
      %s104 = sadd.s32 %s103, 1
      %p107 = scmp.eq.s32.totalorder %s27, 1
      %p108 = scmp.ne.s32.totalorder %s103, %s105
      %p109 = scmp.eq.s32.totalorder %s27, 0
      %p110 = por %p108, %p109
      %p111 = scmp.ne.s32.totalorder %s103, %s105
      %p112 = scmp.eq.s32.totalorder %s32, 1
      %p113 = por %p111, %p112
      %p114 = scmp.ne.s32.totalorder %s105, %s106
      %p115 = scmp.eq.s32.totalorder %s32, 0
      %p116 = por %p114, %p115
      %p117 = scmp.ne.s32.totalorder %s105, %s106
      %p118 = scmp.eq.s32.totalorder %s33, 1
      %p119 = por %p117, %p118
      %p121 = scmp.ne.s32.totalorder %s106, %s120
      %p122 = scmp.eq.s32.totalorder %s33, 0
      %p123 = por %p121, %p122
      %s125 = sadd.s32 %s124, 1
      %p128 = scmp.eq.s32.totalorder %s27, 1
      %p129 = scmp.ne.s32.totalorder %s124, %s126
      %p130 = scmp.eq.s32.totalorder %s27, 0
      %p131 = por %p129, %p130
      %p132 = scmp.ne.s32.totalorder %s124, %s126
      %p133 = scmp.eq.s32.totalorder %s32, 1
      %p134 = por %p132, %p133
      %p135 = scmp.ne.s32.totalorder %s126, %s127
      %p136 = scmp.eq.s32.totalorder %s32, 0
      %p137 = por %p135, %p136
      %p138 = scmp.ne.s32.totalorder %s126, %s127
      %p139 = scmp.eq.s32.totalorder %s33, 1
      %p140 = por %p138, %p139
      %p142 = scmp.ne.s32.totalorder %s127, %s141
      %p143 = scmp.eq.s32.totalorder %s33, 0
      %p144 = por %p142, %p143
      %s146 = sadd.s32 %s145, 1
      %p149 = scmp.eq.s32.totalorder %s27, 1
      %p150 = scmp.ne.s32.totalorder %s145, %s147
      %p151 = scmp.eq.s32.totalorder %s27, 0
      %p152 = por %p150, %p151
      %p153 = scmp.ne.s32.totalorder %s145, %s147
      %p154 = scmp.eq.s32.totalorder %s32, 1
      %p155 = por %p153, %p154
      %p156 = scmp.ne.s32.totalorder %s147, %s148
      %p157 = scmp.eq.s32.totalorder %s32, 0
      %p158 = por %p156, %p157
      %p159 = scmp.ne.s32.totalorder %s147, %s148
      %p160 = scmp.eq.s32.totalorder %s33, 1
      %p161 = por %p159, %p160
      %p163 = scmp.ne.s32.totalorder %s148, %s162
      %p164 = scmp.eq.s32.totalorder %s33, 0
      %p165 = por %p163, %p164
      %s167 = sadd.s32 %s166, 1
      %p170 = scmp.eq.s32.totalorder %s27, 1
      %p171 = scmp.ne.s32.totalorder %s166, %s168
      %p172 = scmp.eq.s32.totalorder %s27, 0
      %p173 = por %p171, %p172
      %p174 = scmp.ne.s32.totalorder %s166, %s168
      %p175 = scmp.eq.s32.totalorder %s32, 1
      %p176 = por %p174, %p175
      %p177 = scmp.ne.s32.totalorder %s168, %s169
      %p178 = scmp.eq.s32.totalorder %s32, 0
      %p179 = por %p177, %p178
      %p180 = scmp.ne.s32.totalorder %s168, %s169
      %p181 = scmp.eq.s32.totalorder %s33, 1
      %p182 = por %p180, %p181
      %p184 = scmp.ne.s32.totalorder %s169, %s183
      %p185 = scmp.eq.s32.totalorder %s33, 0
      %p186 = por %p184, %p185
      %s188 = sadd.s32 %s187, 1
      %p191 = scmp.eq.s32.totalorder %s27, 1
      %p192 = scmp.ne.s32.totalorder %s187, %s189
      %p193 = scmp.eq.s32.totalorder %s27, 0
      %p194 = por %p192, %p193
      %p195 = scmp.ne.s32.totalorder %s187, %s189
      %p196 = scmp.eq.s32.totalorder %s32, 1
      %p197 = por %p195, %p196
      %p198 = scmp.ne.s32.totalorder %s189, %s190
      %p199 = scmp.eq.s32.totalorder %s32, 0
      %p200 = por %p198, %p199
      %p201 = scmp.ne.s32.totalorder %s189, %s190
      %p202 = scmp.eq.s32.totalorder %s33, 1
      %p203 = por %p201, %p202
      %p205 = scmp.ne.s32.totalorder %s190, %s204
      %p206 = scmp.eq.s32.totalorder %s33, 0
      %p207 = por %p205, %p206
      %s209 = sadd.s32 %s208, 1
      %p212 = scmp.eq.s32.totalorder %s27, 1
      %p213 = scmp.ne.s32.totalorder %s208, %s210
      %p214 = scmp.eq.s32.totalorder %s27, 0
      %p215 = por %p213, %p214
      %p216 = scmp.ne.s32.totalorder %s208, %s210
      %p217 = scmp.eq.s32.totalorder %s32, 1
      %p218 = por %p216, %p217
      %p219 = scmp.ne.s32.totalorder %s210, %s211
      %p220 = scmp.eq.s32.totalorder %s32, 0
      %p221 = por %p219, %p220
      %p222 = scmp.ne.s32.totalorder %s210, %s211
      %p223 = scmp.eq.s32.totalorder %s33, 1
      %p224 = por %p222, %p223
      %p226 = scmp.ne.s32.totalorder %s211, %s225
      %p227 = scmp.eq.s32.totalorder %s33, 0
      %p228 = por %p226, %p227
      %s230 = sadd.s32 %s229, 1
      %p233 = scmp.eq.s32.totalorder %s27, 1
      %p234 = scmp.ne.s32.totalorder %s229, %s231
      %p235 = scmp.eq.s32.totalorder %s27, 0
      %p236 = por %p234, %p235
      %p237 = scmp.ne.s32.totalorder %s229, %s231
      %p238 = scmp.eq.s32.totalorder %s32, 1
      %p239 = por %p237, %p238
      %p240 = scmp.ne.s32.totalorder %s231, %s232
      %p241 = scmp.eq.s32.totalorder %s32, 0
      %p242 = por %p240, %p241
      %p243 = scmp.ne.s32.totalorder %s231, %s232
      %p244 = scmp.eq.s32.totalorder %s33, 1
      %p245 = por %p243, %p244
      %p247 = scmp.ne.s32.totalorder %s232, %s246
      %p248 = scmp.eq.s32.totalorder %s33, 0
      %p249 = por %p247, %p248
      %s250 = ssub.s32 %s27, %s34
      %p251 = scmp.eq.s32.totalorder %s250, 0
      %s253 = sadd.s32 %s252, 1
      %s254 = scalar_select %p251, %s252, %s253
      %p257 = pneg %p251
      %p258 = scmp.eq.s32.totalorder %s27, 1
      %p259 = por %p257, %p258
      %p260 = scmp.ne.s32.totalorder %s252, %s255
      %p261 = scmp.eq.s32.totalorder %s27, 0
      %p262 = por %p260, %p261
      %p263 = scmp.ne.s32.totalorder %s252, %s255
      %p264 = scmp.eq.s32.totalorder %s32, 1
      %p265 = por %p263, %p264
      %p266 = scmp.ne.s32.totalorder %s255, %s256
      %p267 = scmp.eq.s32.totalorder %s32, 0
      %p268 = por %p266, %p267
      %p269 = scmp.ne.s32.totalorder %s255, %s256
      %p270 = scmp.eq.s32.totalorder %s33, 1
      %p271 = por %p269, %p270
      %p273 = scmp.ne.s32.totalorder %s256, %s272
      %p274 = scmp.eq.s32.totalorder %s33, 0
      %p275 = por %p273, %p274
      %s276 = ssub.s32 %s27, %s34
      %p277 = scmp.eq.s32.totalorder %s276, 0
      %s279 = sadd.s32 %s278, 1
      %s280 = scalar_select %p277, %s278, %s279
      %p283 = pneg %p277
      %p284 = scmp.eq.s32.totalorder %s27, 1
      %p285 = por %p283, %p284
      %p286 = scmp.ne.s32.totalorder %s278, %s281
      %p287 = scmp.eq.s32.totalorder %s27, 0
      %p288 = por %p286, %p287
      %p289 = scmp.ne.s32.totalorder %s278, %s281
      %p290 = scmp.eq.s32.totalorder %s32, 1
      %p291 = por %p289, %p290
      %p292 = scmp.ne.s32.totalorder %s281, %s282
      %p293 = scmp.eq.s32.totalorder %s32, 0
      %p294 = por %p292, %p293
      %p295 = scmp.ne.s32.totalorder %s281, %s282
      %p296 = scmp.eq.s32.totalorder %s33, 1
      %p297 = por %p295, %p296
      %p299 = scmp.ne.s32.totalorder %s282, %s298
      %p300 = scmp.eq.s32.totalorder %s33, 0
      %p301 = por %p299, %p300
      %s302 = ssub.s32 %s27, %s34
      %p303 = scmp.eq.s32.totalorder %s302, 0
      %s305 = sadd.s32 %s304, 1
      %s306 = scalar_select %p303, %s304, %s305
      %p309 = pneg %p303
      %p310 = scmp.eq.s32.totalorder %s27, 1
      %p311 = por %p309, %p310
      %p312 = scmp.ne.s32.totalorder %s304, %s307
      %p313 = scmp.eq.s32.totalorder %s27, 0
      %p314 = por %p312, %p313
      %p315 = scmp.ne.s32.totalorder %s304, %s307
      %p316 = scmp.eq.s32.totalorder %s32, 1
      %p317 = por %p315, %p316
      %p318 = scmp.ne.s32.totalorder %s307, %s308
      %p319 = scmp.eq.s32.totalorder %s32, 0
      %p320 = por %p318, %p319
      %p321 = scmp.ne.s32.totalorder %s307, %s308
      %p322 = scmp.eq.s32.totalorder %s33, 1
      %p323 = por %p321, %p322
      %p325 = scmp.ne.s32.totalorder %s308, %s324
      %p326 = scmp.eq.s32.totalorder %s33, 0
      %p327 = por %p325, %p326
      %p328 = scmp.le.s32.totalorder 1, %s27
      %p329 = scmp.lt.s32.totalorder %s27, 3
      %p330 = pnand %p328, %p329
      %p331 = pneg %p330
      // Predicated region
      $region9: #{tpu_custom_call.1} parent=5 // pred_check
        _
      $region10: #{tpu_custom_call.1} parent=5 // pred_check_branch
        %333 = sbr.rel (%p330) target = $region12
      $region11: #{tpu_custom_call.1} parent=5 // pred_region
        %s334 = ssub.s32 %s27, 1
        // Predicated region
        $region13: #{tpu_custom_call.1} parent=11 // pred_check
          %p335 = pneg %p74
        $region14: #{tpu_custom_call.1} parent=11 // pred_check_branch
          %337 = sbr.rel (%p335) target = $region16
        $region15: #{tpu_custom_call.1} parent=11 // pred_region
          _
        $region16: #{tpu_custom_call.1} parent=11 // pred_fallthru
          _
        // Predicated region
        $region17: #{tpu_custom_call.1} parent=11 // pred_check
          %p338 = pneg %p95
        $region18: #{tpu_custom_call.1} parent=11 // pred_check_branch
          %340 = sbr.rel (%p338) target = $region20
        $region19: #{tpu_custom_call.1} parent=11 // pred_region
          _
        $region20: #{tpu_custom_call.1} parent=11 // pred_fallthru
          _
        // Predicated region
        $region21: #{tpu_custom_call.1} parent=11 // pred_check
          %p341 = pneg %p116
        $region22: #{tpu_custom_call.1} parent=11 // pred_check_branch
          %343 = sbr.rel (%p341) target = $region24
        $region23: #{tpu_custom_call.1} parent=11 // pred_region
          _
        $region24: #{tpu_custom_call.1} parent=11 // pred_fallthru
          _
        // Predicated region
        $region25: #{tpu_custom_call.1} parent=11 // pred_check
          %p344 = pneg %p137
        $region26: #{tpu_custom_call.1} parent=11 // pred_check_branch
          %346 = sbr.rel (%p344) target = $region28
        $region27: #{tpu_custom_call.1} parent=11 // pred_region
          _
        $region28: #{tpu_custom_call.1} parent=11 // pred_fallthru
          _
        // Predicated region
        $region29: #{tpu_custom_call.1} parent=11 // pred_check
          %p347 = pneg %p158
        $region30: #{tpu_custom_call.1} parent=11 // pred_check_branch
          %349 = sbr.rel (%p347) target = $region32
        $region31: #{tpu_custom_call.1} parent=11 // pred_region
          %s351 = ssub.s32 256, 256
          %352 = vsyncadd [#allocation3], %s351
          %s353 = sshll.u32 [#allocation2], 4
          %s354 = int_to_ptr.vmem [resolvable:$true] %s353
          %359 = dma.hbm_to_vmem [thread:$0]  %s5, 256, %s354, [#allocation3], 64, 64, 4
        $region32: #{tpu_custom_call.1} parent=11 // pred_fallthru
          _
        // Predicated region
        $region33: #{tpu_custom_call.1} parent=11 // pred_check
          %p360 = pneg %p179
        $region34: #{tpu_custom_call.1} parent=11 // pred_check_branch
          %362 = sbr.rel (%p360) target = $region36
        $region35: #{tpu_custom_call.1} parent=11 // pred_region
          %s364 = ssub.s32 256, 256
          %365 = vsyncadd [#allocation6], %s364
          %s366 = sshll.u32 [#allocation5], 4
          %s367 = int_to_ptr.vmem [resolvable:$true] %s366
          %372 = dma.hbm_to_vmem [thread:$0]  %s6, 256, %s367, [#allocation6], 64, 64, 4
        $region36: #{tpu_custom_call.1} parent=11 // pred_fallthru
          _
        // Predicated region
        $region37: #{tpu_custom_call.1} parent=11 // pred_check
          %p373 = pneg %p200
        $region38: #{tpu_custom_call.1} parent=11 // pred_check_branch
          %375 = sbr.rel (%p373) target = $region40
        $region39: #{tpu_custom_call.1} parent=11 // pred_region
          _
        $region40: #{tpu_custom_call.1} parent=11 // pred_fallthru
          _
        // Predicated region
        $region41: #{tpu_custom_call.1} parent=11 // pred_check
          %p376 = pneg %p221
        $region42: #{tpu_custom_call.1} parent=11 // pred_check_branch
          %378 = sbr.rel (%p376) target = $region44
        $region43: #{tpu_custom_call.1} parent=11 // pred_region
          _
        $region44: #{tpu_custom_call.1} parent=11 // pred_fallthru
          _
        // Predicated region
        $region45: #{tpu_custom_call.1} parent=11 // pred_check
          %p379 = pneg %p242
        $region46: #{tpu_custom_call.1} parent=11 // pred_check_branch
          %381 = sbr.rel (%p379) target = $region48
        $region47: #{tpu_custom_call.1} parent=11 // pred_region
          _
        $region48: #{tpu_custom_call.1} parent=11 // pred_fallthru
          _
      $region12: #{tpu_custom_call.1} parent=5 // pred_fallthru
        _
      %p382 = scmp.lt.s32.totalorder %s27, 2
      // Predicated region
      $region49: #{tpu_custom_call.1} parent=5 // pred_check
        %p383 = pneg %p382
      $region50: #{tpu_custom_call.1} parent=5 // pred_check_branch
        %385 = sbr.rel (%p383) target = $region52
      $region51: #{tpu_custom_call.1} parent=5 // pred_region
        // Predicated region
        $region53: #{tpu_custom_call.1} parent=51 // pred_check
          %p386 = pneg %p47
        $region54: #{tpu_custom_call.1} parent=51 // pred_check_branch
          %388 = sbr.rel (%p386) target = $region56
        $region55: #{tpu_custom_call.1} parent=51 // pred_region
          %p389 = scmp.lt.s32.totalorder %s27, 1
          %s390 = scalar_select %p389, %s27, 1
          %s391 = smul.addr %s390, 8
          %s392 = smul.addr %s391, 8
          %s393 = scalar_lea.vmem %s0, %s392
        $region56: #{tpu_custom_call.1} parent=51 // pred_fallthru
          _
      $region52: #{tpu_custom_call.1} parent=5 // pred_fallthru
        _
      %p394 = scmp.le.s32.totalorder 1, %s27
      %p395 = scmp.lt.s32.totalorder %s27, 3
      %p396 = pnand %p394, %p395
      %p397 = pneg %p396
      // Predicated region
      $region57: #{tpu_custom_call.1} parent=5 // pred_check
        _
      $region58: #{tpu_custom_call.1} parent=5 // pred_check_branch
        %399 = sbr.rel (%p396) target = $region60
      $region59: #{tpu_custom_call.1} parent=5 // pred_region
        %s400 = ssub.s32 %s27, 1
        // Predicated region
        $region61: #{tpu_custom_call.1} parent=59 // pred_check
          %p401 = pneg %p158
        $region62: #{tpu_custom_call.1} parent=59 // pred_check_branch
          %403 = sbr.rel (%p401) target = $region64
        $region63: #{tpu_custom_call.1} parent=59 // pred_region
          %404 = dma.done [#allocation3], 256
        $region64: #{tpu_custom_call.1} parent=59 // pred_fallthru
          _
        // Predicated region
        $region65: #{tpu_custom_call.1} parent=59 // pred_check
          %p405 = pneg %p179
        $region66: #{tpu_custom_call.1} parent=59 // pred_check_branch
          %407 = sbr.rel (%p405) target = $region68
        $region67: #{tpu_custom_call.1} parent=59 // pred_region
          %408 = dma.done [#allocation6], 256
        $region68: #{tpu_custom_call.1} parent=59 // pred_fallthru
          _
        %p409 = scmp.lt.s32.totalorder %s32, 1
        %s410 = scalar_select %p409, %s32, 1
        %s411 = smul.addr %s410, 8
        %s412 = smul.addr %s411, 8
        %s413 = scalar_lea.vmem %s0, %s412
        %p414 = pneg %p53
        %p415 = pneg %p50
        %p416 = pneg %p74
        %p417 = pneg %p71
        %p418 = pneg %p95
        %p419 = pneg %p92
        %p420 = pneg %p116
        %p421 = pneg %p113
        %p422 = pneg %p137
        %p423 = pneg %p134
        %p424 = pneg %p158
        %p425 = pneg %p155
        %p426 = pneg %p179
        %p427 = pneg %p176
        %p428 = pneg %p200
        %p429 = pneg %p197
        %p430 = pneg %p221
        %p431 = pneg %p218
        %p432 = pneg %p242
        %p433 = pneg %p239
        %p434 = pneg %p268
        %p435 = pneg %p265
        %s436 = sand.u32 %s255, 1
        %s437 = scalar_lea.sflag [#allocation4], %s436
        %s438 = sand.u32 %s255, 1
        %s439 = smul.addr %s438, 32
        %s440 = scalar_lea.vmem [#allocation7], %s439
        %p441 = pneg %p294
        %p442 = pneg %p291
        %s443 = sand.u32 %s32, 1
        %s444 = scalar_lea.sflag [#allocation9], %s443
        %s445 = sand.u32 %s281, 1
        %s446 = smul.addr %s445, 32
        %s447 = scalar_lea.vmem [#allocation8], %s446
        %p448 = pneg %p320
        %p449 = pneg %p317
        %s450 = sand.u32 %s32, 1
        %s451 = scalar_lea.sflag [#allocation9], %s450
        %s452 = sand.u32 %s307, 1
        %s453 = smul.addr %s452, 32
        %s454 = scalar_lea.vmem [#allocation10], %s453
        %p455 = scmp.lt.s32.totalorder %s32, 1
        %s456 = scalar_select %p455, %s32, 1
        %s457 = smul.addr %s456, 8
        %s458 = smul.addr %s457, 8
        %s459 = scalar_lea.vmem %s0, %s458
        %v461 = vld [vmem:[%s459] sm:$0xff]
        %v462 = vld [vmem:[%s459 + $0x8] sm:$0xff]
        %v463 = vld [vmem:[%s459 + $0x10] sm:$0xff]
        %v464 = vld [vmem:[%s459 + $0x18] sm:$0xff]
        %v465 = vld [vmem:[%s459 + $0x20] sm:$0xff]
        %v466 = vld [vmem:[%s459 + $0x28] sm:$0xff]
        %v467 = vld [vmem:[%s459 + $0x30] sm:$0xff]
        %v468 = vld [vmem:[%s459 + $0x38] sm:$0xff]
        %v469 = vadd.f32 %v461, %v462
        %470 = vadd.xlane.f32.xlu0 %v469
        %v471 = vpop.xlane.xlu0 %470
        %v472 = vadd.f32 %v463, %v464
        %473 = vadd.xlane.f32.xlu0 %v472
        %v474 = vpop.xlane.xlu0 %473
        %v475 = vadd.f32 %v465, %v466
        %476 = vadd.xlane.f32.xlu0 %v475
        %v477 = vpop.xlane.xlu0 %476
        %v478 = vadd.f32 %v467, %v468
        %479 = vadd.xlane.f32.xlu0 %v478
        %v480 = vpop.xlane.xlu0 %479
        %v481 = vmul.f32 %v461, %v461
        %v482 = vmul.f32 %v462, %v462
        %v483 = vmul.f32 %v463, %v463
        %v484 = vmul.f32 %v464, %v464
        %v485 = vmul.f32 %v465, %v465
        %v486 = vmul.f32 %v466, %v466
        %v487 = vmul.f32 %v467, %v467
        %v488 = vmul.f32 %v468, %v468
        %v489 = vadd.f32 %v481, %v482
        %490 = vadd.xlane.f32.xlu0 %v489
        %v491 = vpop.xlane.xlu0 %490
        %v492 = vadd.f32 %v483, %v484
        %493 = vadd.xlane.f32.xlu0 %v492
        %v494 = vpop.xlane.xlu0 %493
        %v495 = vadd.f32 %v485, %v486
        %496 = vadd.xlane.f32.xlu0 %v495
        %v497 = vpop.xlane.xlu0 %496
        %v498 = vadd.f32 %v487, %v488
        %499 = vadd.xlane.f32.xlu0 %v498
        %v500 = vpop.xlane.xlu0 %499
        %v501 = vlaneseq
        %v502 = vand.u32 %v501, 127
        %vm503 = vcmp.eq.s32.totalorder %v502, 0
        %v504 = vsel %vm503, %v471, %v491
        %v505 = vsel %vm503, %v474, %v494
        %v506 = vsel %vm503, %v477, %v497
        %v507 = vsel %vm503, %v480, %v500
        %v508 = vld [vmem:[%s1] sm:$0xff]
        %v509 = vld [vmem:[%s1 + $0x8] sm:$0xff]
        %v510 = vld [vmem:[%s1 + $0x10] sm:$0xff]
        %v511 = vld [vmem:[%s1 + $0x18] sm:$0xff]
        %vm512 = vcmask 261120
        %v514 = vsel %vm512, %v508, 0
        %v517 = vsel %vm512, %v509, 0
        %v520 = vsel %vm512, %v510, 0
        %v523 = vsel %vm512, %v511, 0
        %525 = vmatprep.subr.mxu0 0.0
        %526 = vmatpush1.msra.mxu0 %v504
        %527 = vmatprep.subr.mxu0 0.0
        %528 = vmatpush1.msra.mxu0 %v505
        %529 = vmatprep.subr.mxu0 0.0
        %530 = vmatpush1.msra.mxu0 %v506
        %531 = vmatprep.subr.mxu0 0.0
        %532 = vmatpush1.msra.mxu0 %v507
        %533 = vmatprep.subr.mxu0 0.0
        %534 = vmatpush1.msra.mxu0 0.0
        %535 = vmatprep.subr.mxu0 0.0
        %536 = vmatpush1.msra.mxu0 0.0
        %537 = vmatprep.subr.mxu0 0.0
        %538 = vmatpush1.msra.mxu0 0.0
        %539 = vmatprep.subr.mxu0 0.0
        %540 = vmatpush1.msra.mxu0 0.0
        %541 = vmatprep.subr.mxu0 0.0
        %542 = vmatpush1.msra.mxu0 0.0
        %543 = vmatprep.subr.mxu0 0.0
        %544 = vmatpush1.msra.mxu0 0.0
        %545 = vmatprep.subr.mxu0 0.0
        %546 = vmatpush1.msra.mxu0 0.0
        %547 = vmatprep.subr.mxu0 0.0
        %548 = vmatpush1.msra.mxu0 0.0
        %549 = vmatprep.subr.mxu0 0.0
        %550 = vmatpush1.msra.mxu0 0.0
        %551 = vmatprep.subr.mxu0 0.0
        %552 = vmatpush1.msra.mxu0 0.0
        %553 = vmatprep.subr.mxu0 0.0
        %554 = vmatpush1.msra.mxu0 0.0
        %555 = vmatprep.subr.mxu0 0.0
        %556 = vmatpush1.msra.mxu0 0.0
        %557 = vmatprep.subr.mxu0 0.0
        %558 = vmatpush1.msra.mxu0 0.0
        %559 = vmatprep.subr.mxu0 0.0
        %560 = vmatpush1.msra.mxu0 0.0
        %561 = vmatprep.subr.mxu0 0.0
        %562 = vmatpush1.msra.mxu0 0.0
        %563 = vmatprep.subr.mxu0 0.0
        %564 = vmatpush1.msra.mxu0 0.0
        %565 = vmatprep.subr.mxu0 0.0
        %566 = vmatpush1.msra.mxu0 0.0
        %567 = vmatprep.subr.mxu0 0.0
        %568 = vmatpush1.msra.mxu0 0.0
        %569 = vmatprep.subr.mxu0 0.0
        %570 = vmatpush1.msra.mxu0 0.0
        %571 = vmatprep.subr.mxu0 0.0
        %572 = vmatpush1.msra.mxu0 0.0
        %573 = vmatprep.subr.mxu0 0.0
        %574 = vmatpush1.msra.mxu0 0.0
        %575 = vmatprep.subr.mxu0 0.0
        %576 = vmatpush1.msra.mxu0 0.0
        %577 = vmatprep.subr.mxu0 0.0
        %578 = vmatpush1.msra.mxu0 0.0
        %579 = vmatprep.subr.mxu0 0.0
        %580 = vmatpush1.msra.mxu0 0.0
        %581 = vmatprep.subr.mxu0 0.0
        %582 = vmatpush1.msra.mxu0 0.0
        %583 = vmatprep.subr.mxu0 0.0
        %584 = vmatpush1.msra.mxu0 0.0
        %585 = vmatprep.subr.mxu0 0.0
        %586 = vmatpush1.msra.mxu0 0.0
        %587 = vmatprep.subr.mxu0 0.0
        %588 = vmatpush1.msra.mxu0 0.0
        %589 = vmatprep.mubr.f32.mxu0 0.0
        %590 = vmatmul.mubr.f32.gmra.mrb[0].mxu0 %v514
        %v591 = vpop.f32.mrb[0].mxu0
        %v592 = vadd.f32 0.0, %v591
        %v593 = vpop.f32.mrb[0].mxu0
        %594 = vmatprep.mubr.f32.mxu0 0.0
        %595 = vmatmul.mubr.f32.gmra.mrb[0].mxu0 %v517
        %v596 = vpop.f32.mrb[0].mxu0
        %v597 = vadd.f32 0.0, %v596
        %v598 = vpop.f32.mrb[0].mxu0
        %599 = vmatprep.mubr.f32.mxu0 0.0
        %600 = vmatmul.mubr.f32.gmra.mrb[0].mxu0 %v520
        %v601 = vpop.f32.mrb[0].mxu0
        %v602 = vadd.f32 0.0, %v601
        %v603 = vpop.f32.mrb[0].mxu0
        %604 = vmatprep.mubr.f32.mxu0 0.0
        %605 = vmatmul.mubr.f32.gmra.mrb[0].mxu0 %v523
        %v606 = vpop.f32.mrb[0].mxu0
        %v607 = vadd.f32 0.0, %v606
        %v608 = vpop.f32.mrb[0].mxu0
        %609 = vdwg.mxu0
        %v610 = vmul.f32 %v592, %v592
        %v611 = vmul.f32 %v597, %v597
        %v612 = vmul.f32 %v602, %v602
        %v613 = vmul.f32 %v607, %v607
        %618 = vrot.lane.b32.xlu0 %v610, 1
        %v619 = vpop.permute.xlu0 %618
        %620 = vrot.lane.b32.xlu0 %v611, 1
        %v621 = vpop.permute.xlu0 %620
        %622 = vrot.lane.b32.xlu0 %v612, 1
        %v623 = vpop.permute.xlu0 %622
        %624 = vrot.lane.b32.xlu0 %v613, 1
        %v625 = vpop.permute.xlu0 %624
        %v630 = vsub.f32 %v592, %v619
        %v631 = vsub.f32 %v597, %v621
        %v632 = vsub.f32 %v602, %v623
        %v633 = vsub.f32 %v607, %v625
        %635 = vset.pattern.permute.xlu0 0
        %636 = vperm.xlu0 %635, %v592
        %v637 = vpop.permute.xlu0 %636
        %640 = vset.pattern.permute.xlu0 0
        %641 = vperm.xlu0 %640, %v597
        %v642 = vpop.permute.xlu0 %641
        %645 = vset.pattern.permute.xlu0 0
        %646 = vperm.xlu0 %645, %v602
        %v647 = vpop.permute.xlu0 %646
        %650 = vset.pattern.permute.xlu0 0
        %651 = vperm.xlu0 %650, %v607
        %v652 = vpop.permute.xlu0 %651
        %v654 = vsub.f32 %v461, %v637
        %v655 = vsub.f32 %v462, %v637
        %v656 = vsub.f32 %v463, %v642
        %v657 = vsub.f32 %v464, %v642
        %v658 = vsub.f32 %v465, %v647
        %v659 = vsub.f32 %v466, %v647
        %v660 = vsub.f32 %v467, %v652
        %v661 = vsub.f32 %v468, %v652
        %v662 = vadd.f32 %v630, 1e-05
        %v663 = vadd.f32 %v631, 1e-05
        %v664 = vadd.f32 %v632, 1e-05
        %v665 = vadd.f32 %v633, 1e-05
        %v666 = vrsqrt.pop %v662
        %v667 = vrsqrt.pop %v663
        %v668 = vrsqrt.pop %v664
        %v669 = vrsqrt.pop %v665
        %v670 = vld [vmem:[%s2] sm:$0xff]
        %v671 = vld [vmem:[%s2 + $0x8] sm:$0xff]
        %v672 = vld [vmem:[%s2 + $0x10] sm:$0xff]
        %v673 = vld [vmem:[%s2 + $0x18] sm:$0xff]
        %678 = vrot.lane.b32.xlu0 %v670, 1
        %v679 = vpop.permute.xlu0 %678
        %680 = vrot.lane.b32.xlu0 %v671, 1
        %v681 = vpop.permute.xlu0 %680
        %682 = vrot.lane.b32.xlu0 %v672, 1
        %v683 = vpop.permute.xlu0 %682
        %684 = vrot.lane.b32.xlu0 %v673, 1
        %v685 = vpop.permute.xlu0 %684
        %v690 = vmul.f32 %v666, %v679
        %v691 = vmul.f32 %v667, %v681
        %v692 = vmul.f32 %v668, %v683
        %v693 = vmul.f32 %v669, %v685
        %695 = vset.pattern.permute.xlu0 1
        %696 = vperm.xlu0 %695, %v690
        %v697 = vpop.permute.xlu0 %696
        %700 = vset.pattern.permute.xlu0 1
        %701 = vperm.xlu0 %700, %v691
        %v702 = vpop.permute.xlu0 %701
        %705 = vset.pattern.permute.xlu0 1
        %706 = vperm.xlu0 %705, %v692
        %v707 = vpop.permute.xlu0 %706
        %710 = vset.pattern.permute.xlu0 1
        %711 = vperm.xlu0 %710, %v693
        %v712 = vpop.permute.xlu0 %711
        %v714 = vmul.f32 %v654, %v697
        %v715 = vmul.f32 %v655, %v697
        %v716 = vmul.f32 %v656, %v702
        %v717 = vmul.f32 %v657, %v702
        %v718 = vmul.f32 %v658, %v707
        %v719 = vmul.f32 %v659, %v707
        %v720 = vmul.f32 %v660, %v712
        %v721 = vmul.f32 %v661, %v712
        %v722 = vld [vmem:[%s3] sm:$0xff]
        %v723 = vld [vmem:[%s3 + $0x8] sm:$0xff]
        %v724 = vld [vmem:[%s3 + $0x10] sm:$0xff]
        %v725 = vld [vmem:[%s3 + $0x18] sm:$0xff]
        %727 = vset.pattern.permute.xlu0 0
        %728 = vperm.xlu0 %727, %v722
        %v729 = vpop.permute.xlu0 %728
        %732 = vset.pattern.permute.xlu0 0
        %733 = vperm.xlu0 %732, %v723
        %v734 = vpop.permute.xlu0 %733
        %737 = vset.pattern.permute.xlu0 0
        %738 = vperm.xlu0 %737, %v724
        %v739 = vpop.permute.xlu0 %738
        %742 = vset.pattern.permute.xlu0 0
        %743 = vperm.xlu0 %742, %v725
        %v744 = vpop.permute.xlu0 %743
        %v746 = vadd.f32 %v714, %v729
        %v747 = vadd.f32 %v715, %v729
        %v748 = vadd.f32 %v716, %v734
        %v749 = vadd.f32 %v717, %v734
        %v750 = vadd.f32 %v718, %v739
        %v751 = vadd.f32 %v719, %v739
        %v752 = vadd.f32 %v720, %v744
        %v753 = vadd.f32 %v721, %v744
        %v754 = vpack.c.bf16 %v748, %v746
        %v755 = vpack.c.bf16 %v749, %v747
        %v756 = vpack.c.bf16 %v752, %v750
        %v757 = vpack.c.bf16 %v753, %v751
        %v758 = vld [vmem:[%s4] sm:$0xf]
        %v759 = vld [vmem:[%s4 + $0x4] sm:$0xf]
        %v760 = vld [vmem:[%s4 + $0x8] sm:$0xf]
        %v761 = vld [vmem:[%s4 + $0xc] sm:$0xf]
        %v762 = vld [vmem:[%s7] sm:$0xff]
        %v763 = vld [vmem:[%s7 + $0x8] sm:$0xff]
        %v764 = vld [vmem:[%s7 + $0x10] sm:$0xff]
        %v765 = vld [vmem:[%s7 + $0x18] sm:$0xff]
        %767 = vset.pattern.permute.xlu0 0
        %768 = vperm.xlu0 %767, %v762
        %v769 = vpop.permute.xlu0 %768
        %772 = vset.pattern.permute.xlu0 0
        %773 = vperm.xlu0 %772, %v763
        %v774 = vpop.permute.xlu0 %773
        %777 = vset.pattern.permute.xlu0 0
        %778 = vperm.xlu0 %777, %v764
        %v779 = vpop.permute.xlu0 %778
        %782 = vset.pattern.permute.xlu0 0
        %783 = vperm.xlu0 %782, %v765
        %v784 = vpop.permute.xlu0 %783
        %v790 = vunpack.c.l.b16 %v758
        %v791 = vunpack.c.l.b16 %v759
        %v792 = vunpack.c.l.b16 %v760
        %v793 = vunpack.c.l.b16 %v761
        %v794 = vpack.c.b16 %v791, %v790
        %v795 = vpack.c.b16 %v793, %v792
        %v797 = vsel %vm512, %v794, 0
        %v800 = vsel %vm512, %v795, 0
        %802 = vmatprep.subr.bf16.mxu0 %v755
        %803 = vmatpush1.bf16.msra.mxu0 %v754
        %804 = vmatprep.subr.bf16.mxu0 %v757
        %805 = vmatpush1.bf16.msra.mxu0 %v756
        %806 = vmatprep.subr.bf16.mxu0 0
        %807 = vmatpush1.bf16.msra.mxu0 0
        %808 = vmatprep.subr.bf16.mxu0 0
        %809 = vmatpush1.bf16.msra.mxu0 0
        %810 = vmatprep.subr.bf16.mxu0 0
        %811 = vmatpush1.bf16.msra.mxu0 0
        %812 = vmatprep.subr.bf16.mxu0 0
        %813 = vmatpush1.bf16.msra.mxu0 0
        %814 = vmatprep.subr.bf16.mxu0 0
        %815 = vmatpush1.bf16.msra.mxu0 0
        %816 = vmatprep.subr.bf16.mxu0 0
        %817 = vmatpush1.bf16.msra.mxu0 0
        %818 = vmatprep.subr.bf16.mxu0 0
        %819 = vmatpush1.bf16.msra.mxu0 0
        %820 = vmatprep.subr.bf16.mxu0 0
        %821 = vmatpush1.bf16.msra.mxu0 0
        %822 = vmatprep.subr.bf16.mxu0 0
        %823 = vmatpush1.bf16.msra.mxu0 0
        %824 = vmatprep.subr.bf16.mxu0 0
        %825 = vmatpush1.bf16.msra.mxu0 0
        %826 = vmatprep.subr.bf16.mxu0 0
        %827 = vmatpush1.bf16.msra.mxu0 0
        %828 = vmatprep.subr.bf16.mxu0 0
        %829 = vmatpush1.bf16.msra.mxu0 0
        %830 = vmatprep.subr.bf16.mxu0 0
        %831 = vmatpush1.bf16.msra.mxu0 0
        %832 = vmatprep.subr.bf16.mxu0 0
        %833 = vmatpush1.bf16.msra.mxu0 0
        %834 = vmatprep.mubr.bf16.mxu0 0
        %835 = vmatmul.mubr.bf16.gmra.mrb[0].mxu0 %v797
        %v836 = vpop.f32.mrb[0].mxu0
        %v837 = vadd.f32 %v769, %v836
        %v838 = vpop.f32.mrb[0].mxu0
        %v839 = vadd.f32 %v769, %v838
        %v840 = vpop.f32.mrb[0].mxu0
        %v841 = vadd.f32 %v774, %v840
        %v842 = vpop.f32.mrb[0].mxu0
        %v843 = vadd.f32 %v774, %v842
        %844 = vmatprep.mubr.bf16.mxu0 0
        %845 = vmatmul.mubr.bf16.gmra.mrb[0].mxu0 %v800
        %v846 = vpop.f32.mrb[0].mxu0
        %v847 = vadd.f32 %v779, %v846
        %v848 = vpop.f32.mrb[0].mxu0
        %v849 = vadd.f32 %v779, %v848
        %v850 = vpop.f32.mrb[0].mxu0
        %v851 = vadd.f32 %v784, %v850
        %v852 = vpop.f32.mrb[0].mxu0
        %v853 = vadd.f32 %v784, %v852
        %854 = vdwg.mxu0
        %v855 = vmul.f32 %v837, 0.17677669
        %v856 = vmul.f32 %v839, 0.17677669
        %v857 = vmul.f32 %v841, 0.17677669
        %v858 = vmul.f32 %v843, 0.17677669
        %v859 = vmul.f32 %v847, 0.17677669
        %v860 = vmul.f32 %v849, 0.17677669
        %v861 = vmul.f32 %v851, 0.17677669
        %v862 = vmul.f32 %v853, 0.17677669
        %v863 = vpack.c.bf16 %v857, %v855
        %v864 = vpack.c.bf16 %v858, %v856
        %v865 = vpack.c.bf16 %v861, %v859
        %v866 = vpack.c.bf16 %v862, %v860
        %v871 = vunpack.c.l.b16 %v863
        %v872 = vunpack.c.l.b16 %v864
        %v873 = vunpack.c.h.b16 %v863
        %v874 = vunpack.c.h.b16 %v864
        %v875 = vunpack.c.l.b16 %v865
        %v876 = vunpack.c.l.b16 %v866
        %v877 = vunpack.c.h.b16 %v865
        %v878 = vunpack.c.h.b16 %v866
        %v879 = vpack.c.b16 %v872, %v871
        %v880 = vpack.c.b16 %v874, %v873
        %v881 = vpack.c.b16 %v876, %v875
        %v882 = vpack.c.b16 %v878, %v877
        %887 = vst [vmem:[%s440] sm:$0xff] %v879
        %888 = vst [vmem:[%s440 + $0x8] sm:$0xff] %v880
        %889 = vst [vmem:[%s440 + $0x10] sm:$0xff] %v881
        %890 = vst [vmem:[%s440 + $0x18] sm:$0xff] %v882
        %v891 = vld [vmem:[#allocation2] sm:$0xf]
        %v892 = vld [vmem:[#allocation2 + $0x4] sm:$0xf]
        %v893 = vld [vmem:[#allocation2 + $0x8] sm:$0xf]
        %v894 = vld [vmem:[#allocation2 + $0xc] sm:$0xf]
        %v895 = vld [vmem:[%s8] sm:$0xff]
        %v896 = vld [vmem:[%s8 + $0x8] sm:$0xff]
        %v897 = vld [vmem:[%s8 + $0x10] sm:$0xff]
        %v898 = vld [vmem:[%s8 + $0x18] sm:$0xff]
        %900 = vset.pattern.permute.xlu0 0
        %901 = vperm.xlu0 %900, %v895
        %v902 = vpop.permute.xlu0 %901
        %905 = vset.pattern.permute.xlu0 0
        %906 = vperm.xlu0 %905, %v896
        %v907 = vpop.permute.xlu0 %906
        %910 = vset.pattern.permute.xlu0 0
        %911 = vperm.xlu0 %910, %v897
        %v912 = vpop.permute.xlu0 %911
        %915 = vset.pattern.permute.xlu0 0
        %916 = vperm.xlu0 %915, %v898
        %v917 = vpop.permute.xlu0 %916
        %v923 = vunpack.c.l.b16 %v891
        %v924 = vunpack.c.l.b16 %v892
        %v925 = vunpack.c.l.b16 %v893
        %v926 = vunpack.c.l.b16 %v894
        %v927 = vpack.c.b16 %v924, %v923
        %v928 = vpack.c.b16 %v926, %v925
        %v930 = vsel %vm512, %v927, 0
        %v933 = vsel %vm512, %v928, 0
        %935 = vmatprep.subr.bf16.mxu0 %v755
        %936 = vmatpush1.bf16.msra.mxu0 %v754
        %937 = vmatprep.subr.bf16.mxu0 %v757
        %938 = vmatpush1.bf16.msra.mxu0 %v756
        %939 = vmatprep.subr.bf16.mxu0 0
        %940 = vmatpush1.bf16.msra.mxu0 0
        %941 = vmatprep.subr.bf16.mxu0 0
        %942 = vmatpush1.bf16.msra.mxu0 0
        %943 = vmatprep.subr.bf16.mxu0 0
        %944 = vmatpush1.bf16.msra.mxu0 0
        %945 = vmatprep.subr.bf16.mxu0 0
        %946 = vmatpush1.bf16.msra.mxu0 0
        %947 = vmatprep.subr.bf16.mxu0 0
        %948 = vmatpush1.bf16.msra.mxu0 0
        %949 = vmatprep.subr.bf16.mxu0 0
        %950 = vmatpush1.bf16.msra.mxu0 0
        %951 = vmatprep.subr.bf16.mxu0 0
        %952 = vmatpush1.bf16.msra.mxu0 0
        %953 = vmatprep.subr.bf16.mxu0 0
        %954 = vmatpush1.bf16.msra.mxu0 0
        %955 = vmatprep.subr.bf16.mxu0 0
        %956 = vmatpush1.bf16.msra.mxu0 0
        %957 = vmatprep.subr.bf16.mxu0 0
        %958 = vmatpush1.bf16.msra.mxu0 0
        %959 = vmatprep.subr.bf16.mxu0 0
        %960 = vmatpush1.bf16.msra.mxu0 0
        %961 = vmatprep.subr.bf16.mxu0 0
        %962 = vmatpush1.bf16.msra.mxu0 0
        %963 = vmatprep.subr.bf16.mxu0 0
        %964 = vmatpush1.bf16.msra.mxu0 0
        %965 = vmatprep.subr.bf16.mxu0 0
        %966 = vmatpush1.bf16.msra.mxu0 0
        %967 = vmatprep.mubr.bf16.mxu0 0
        %968 = vmatmul.mubr.bf16.gmra.mrb[0].mxu0 %v930
        %v969 = vpop.f32.mrb[0].mxu0
        %v970 = vadd.f32 %v902, %v969
        %v971 = vpop.f32.mrb[0].mxu0
        %v972 = vadd.f32 %v902, %v971
        %v973 = vpop.f32.mrb[0].mxu0
        %v974 = vadd.f32 %v907, %v973
        %v975 = vpop.f32.mrb[0].mxu0
        %v976 = vadd.f32 %v907, %v975
        %977 = vmatprep.mubr.bf16.mxu0 0
        %978 = vmatmul.mubr.bf16.gmra.mrb[0].mxu0 %v933
        %v979 = vpop.f32.mrb[0].mxu0
        %v980 = vadd.f32 %v912, %v979
        %v981 = vpop.f32.mrb[0].mxu0
        %v982 = vadd.f32 %v912, %v981
        %v983 = vpop.f32.mrb[0].mxu0
        %v984 = vadd.f32 %v917, %v983
        %v985 = vpop.f32.mrb[0].mxu0
        %v986 = vadd.f32 %v917, %v985
        %987 = vdwg.mxu0
        %v988 = vpack.c.bf16 %v974, %v970
        %v989 = vpack.c.bf16 %v976, %v972
        %v990 = vpack.c.bf16 %v984, %v980
        %v991 = vpack.c.bf16 %v986, %v982
        %v996 = vunpack.c.l.b16 %v988
        %v997 = vunpack.c.l.b16 %v989
        %v998 = vunpack.c.h.b16 %v988
        %v999 = vunpack.c.h.b16 %v989
        %v1000 = vunpack.c.l.b16 %v990
        %v1001 = vunpack.c.l.b16 %v991
        %v1002 = vunpack.c.h.b16 %v990
        %v1003 = vunpack.c.h.b16 %v991
        %v1004 = vpack.c.b16 %v997, %v996
        %v1005 = vpack.c.b16 %v999, %v998
        %v1006 = vpack.c.b16 %v1001, %v1000
        %v1007 = vpack.c.b16 %v1003, %v1002
        %1012 = vst [vmem:[%s447] sm:$0xff] %v1004
        %1013 = vst [vmem:[%s447 + $0x8] sm:$0xff] %v1005
        %1014 = vst [vmem:[%s447 + $0x10] sm:$0xff] %v1006
        %1015 = vst [vmem:[%s447 + $0x18] sm:$0xff] %v1007
        %v1016 = vld [vmem:[#allocation5] sm:$0xf]
        %v1017 = vld [vmem:[#allocation5 + $0x4] sm:$0xf]
        %v1018 = vld [vmem:[#allocation5 + $0x8] sm:$0xf]
        %v1019 = vld [vmem:[#allocation5 + $0xc] sm:$0xf]
        %v1020 = vld [vmem:[%s9] sm:$0xff]
        %v1021 = vld [vmem:[%s9 + $0x8] sm:$0xff]
        %v1022 = vld [vmem:[%s9 + $0x10] sm:$0xff]
        %v1023 = vld [vmem:[%s9 + $0x18] sm:$0xff]
        %1025 = vset.pattern.permute.xlu0 0
        %1026 = vperm.xlu0 %1025, %v1020
        %v1027 = vpop.permute.xlu0 %1026
        %1030 = vset.pattern.permute.xlu0 0
        %1031 = vperm.xlu0 %1030, %v1021
        %v1032 = vpop.permute.xlu0 %1031
        %1035 = vset.pattern.permute.xlu0 0
        %1036 = vperm.xlu0 %1035, %v1022
        %v1037 = vpop.permute.xlu0 %1036
        %1040 = vset.pattern.permute.xlu0 0
        %1041 = vperm.xlu0 %1040, %v1023
        %v1042 = vpop.permute.xlu0 %1041
        %v1048 = vunpack.c.l.b16 %v1016
        %v1049 = vunpack.c.l.b16 %v1017
        %v1050 = vunpack.c.l.b16 %v1018
        %v1051 = vunpack.c.l.b16 %v1019
        %v1052 = vpack.c.b16 %v1049, %v1048
        %v1053 = vpack.c.b16 %v1051, %v1050
        %v1055 = vsel %vm512, %v1052, 0
        %v1058 = vsel %vm512, %v1053, 0
        %1060 = vmatprep.subr.bf16.mxu0 %v755
        %1061 = vmatpush1.bf16.msra.mxu0 %v754
        %1062 = vmatprep.subr.bf16.mxu0 %v757
        %1063 = vmatpush1.bf16.msra.mxu0 %v756
        %1064 = vmatprep.subr.bf16.mxu0 0
        %1065 = vmatpush1.bf16.msra.mxu0 0
        %1066 = vmatprep.subr.bf16.mxu0 0
        %1067 = vmatpush1.bf16.msra.mxu0 0
        %1068 = vmatprep.subr.bf16.mxu0 0
        %1069 = vmatpush1.bf16.msra.mxu0 0
        %1070 = vmatprep.subr.bf16.mxu0 0
        %1071 = vmatpush1.bf16.msra.mxu0 0
        %1072 = vmatprep.subr.bf16.mxu0 0
        %1073 = vmatpush1.bf16.msra.mxu0 0
        %1074 = vmatprep.subr.bf16.mxu0 0
        %1075 = vmatpush1.bf16.msra.mxu0 0
        %1076 = vmatprep.subr.bf16.mxu0 0
        %1077 = vmatpush1.bf16.msra.mxu0 0
        %1078 = vmatprep.subr.bf16.mxu0 0
        %1079 = vmatpush1.bf16.msra.mxu0 0
        %1080 = vmatprep.subr.bf16.mxu0 0
        %1081 = vmatpush1.bf16.msra.mxu0 0
        %1082 = vmatprep.subr.bf16.mxu0 0
        %1083 = vmatpush1.bf16.msra.mxu0 0
        %1084 = vmatprep.subr.bf16.mxu0 0
        %1085 = vmatpush1.bf16.msra.mxu0 0
        %1086 = vmatprep.subr.bf16.mxu0 0
        %1087 = vmatpush1.bf16.msra.mxu0 0
        %1088 = vmatprep.subr.bf16.mxu0 0
        %1089 = vmatpush1.bf16.msra.mxu0 0
        %1090 = vmatprep.subr.bf16.mxu0 0
        %1091 = vmatpush1.bf16.msra.mxu0 0
        %1092 = vmatprep.mubr.bf16.mxu0 0
        %1093 = vmatmul.mubr.bf16.gmra.mrb[0].mxu0 %v1055
        %v1094 = vpop.f32.mrb[0].mxu0
        %v1095 = vadd.f32 %v1027, %v1094
        %v1096 = vpop.f32.mrb[0].mxu0
        %v1097 = vadd.f32 %v1027, %v1096
        %v1098 = vpop.f32.mrb[0].mxu0
        %v1099 = vadd.f32 %v1032, %v1098
        %v1100 = vpop.f32.mrb[0].mxu0
        %v1101 = vadd.f32 %v1032, %v1100
        %1102 = vmatprep.mubr.bf16.mxu0 0
        %1103 = vmatmul.mubr.bf16.gmra.mrb[0].mxu0 %v1058
        %v1104 = vpop.f32.mrb[0].mxu0
        %v1105 = vadd.f32 %v1037, %v1104
        %v1106 = vpop.f32.mrb[0].mxu0
        %v1107 = vadd.f32 %v1037, %v1106
        %v1108 = vpop.f32.mrb[0].mxu0
        %v1109 = vadd.f32 %v1042, %v1108
        %v1110 = vpop.f32.mrb[0].mxu0
        %v1111 = vadd.f32 %v1042, %v1110
        %1112 = vdwg.mxu0
        %v1113 = vpack.c.bf16 %v1099, %v1095
        %v1114 = vpack.c.bf16 %v1101, %v1097
        %v1115 = vpack.c.bf16 %v1109, %v1105
        %v1116 = vpack.c.bf16 %v1111, %v1107
        %v1121 = vunpack.c.l.b16 %v1113
        %v1122 = vunpack.c.l.b16 %v1114
        %v1123 = vunpack.c.h.b16 %v1113
        %v1124 = vunpack.c.h.b16 %v1114
        %v1125 = vunpack.c.l.b16 %v1115
        %v1126 = vunpack.c.l.b16 %v1116
        %v1127 = vunpack.c.h.b16 %v1115
        %v1128 = vunpack.c.h.b16 %v1116
        %v1129 = vpack.c.b16 %v1122, %v1121
        %v1130 = vpack.c.b16 %v1124, %v1123
        %v1131 = vpack.c.b16 %v1126, %v1125
        %v1132 = vpack.c.b16 %v1128, %v1127
        %1137 = vst [vmem:[%s454] sm:$0xff] %v1129
        %1138 = vst [vmem:[%s454 + $0x8] sm:$0xff] %v1130
        %1139 = vst [vmem:[%s454 + $0x10] sm:$0xff] %v1131
        %1140 = vst [vmem:[%s454 + $0x18] sm:$0xff] %v1132
        %s1141 = sand.u32 %s255, 1
        %s1142 = scalar_lea.sflag [#allocation4], %s1141
        %s1143 = sand.u32 %s255, 1
        %s1144 = smul.addr %s1143, 32
        %s1145 = scalar_lea.vmem [#allocation7], %s1144
        %s1146 = sand.u32 %s32, 1
        %s1147 = scalar_lea.sflag [#allocation9], %s1146
        %s1148 = sand.u32 %s281, 1
        %s1149 = smul.addr %s1148, 32
        %s1150 = scalar_lea.vmem [#allocation8], %s1149
        %s1151 = sand.u32 %s32, 1
        %s1152 = scalar_lea.sflag [#allocation9], %s1151
        %s1153 = sand.u32 %s307, 1
        %s1154 = smul.addr %s1153, 32
        %s1155 = scalar_lea.vmem [#allocation10], %s1154
        // Predicated region
        $region69: #{tpu_custom_call.1} parent=59 // pred_check
          %p1156 = pneg %p265
        $region70: #{tpu_custom_call.1} parent=59 // pred_check_branch
          %1158 = sbr.rel (%p1156) target = $region72
        $region71: #{tpu_custom_call.1} parent=59 // pred_region
          %s1160 = ssub.s32 512, 512
          %1161 = vsyncadd %s1142, %s1160
          %s1162 = smul.addr %s32, 8
          %s1163 = smul.addr %s1162, 64
          %s1164 = scalar_lea.hbm %s10, %s1163
          %s1165 = sshll.u32 %s1145, 4
          %s1166 = int_to_ptr.vmem [resolvable:$true] %s1165
          %1171 = dma.vmem_to_hbm [thread:$0]  %s1166, 512, %s1164, %s1142, 128, 128, 8
        $region72: #{tpu_custom_call.1} parent=59 // pred_fallthru
          _
        // Predicated region
        $region73: #{tpu_custom_call.1} parent=59 // pred_check
          %p1172 = pneg %p291
        $region74: #{tpu_custom_call.1} parent=59 // pred_check_branch
          %1174 = sbr.rel (%p1172) target = $region76
        $region75: #{tpu_custom_call.1} parent=59 // pred_region
          %s1176 = ssub.s32 512, 512
          %1177 = vsyncadd %s1147, %s1176
          %s1178 = smul.addr %s32, 8
          %s1179 = smul.addr %s1178, 64
          %s1180 = scalar_lea.hbm %s11, %s1179
          %s1181 = sshll.u32 %s1150, 4
          %s1182 = int_to_ptr.vmem [resolvable:$true] %s1181
          %1187 = dma.vmem_to_hbm [thread:$0]  %s1182, 512, %s1180, %s1147, 128, 128, 8
        $region76: #{tpu_custom_call.1} parent=59 // pred_fallthru
          _
        // Predicated region
        $region77: #{tpu_custom_call.1} parent=59 // pred_check
          %p1188 = pneg %p317
        $region78: #{tpu_custom_call.1} parent=59 // pred_check_branch
          %1190 = sbr.rel (%p1188) target = $region80
        $region79: #{tpu_custom_call.1} parent=59 // pred_region
          %s1192 = ssub.s32 512, 512
          %1193 = vsyncadd %s1152, %s1192
          %s1194 = smul.addr %s32, 8
          %s1195 = smul.addr %s1194, 64
          %s1196 = scalar_lea.hbm %s12, %s1195
          %s1197 = sshll.u32 %s1155, 4
          %s1198 = int_to_ptr.vmem [resolvable:$true] %s1197
          %1203 = dma.vmem_to_hbm [thread:$0]  %s1198, 512, %s1196, %s1152, 128, 128, 8
        $region80: #{tpu_custom_call.1} parent=59 // pred_fallthru
          _
      $region60: #{tpu_custom_call.1} parent=5 // pred_fallthru
        _
      %p1204 = scmp.le.s32.totalorder 2, %s27
      // Predicated region
      $region81: #{tpu_custom_call.1} parent=5 // pred_check
        %p1205 = pneg %p1204
      $region82: #{tpu_custom_call.1} parent=5 // pred_check_branch
        %1207 = sbr.rel (%p1205) target = $region84
      $region83: #{tpu_custom_call.1} parent=5 // pred_region
        %s1208 = ssub.s32 %s27, 2
        // Predicated region
        $region85: #{tpu_custom_call.1} parent=83 // pred_check
          %p1209 = pneg %p271
        $region86: #{tpu_custom_call.1} parent=83 // pred_check_branch
          %1211 = sbr.rel (%p1209) target = $region88
        $region87: #{tpu_custom_call.1} parent=83 // pred_region
          %s1212 = sand.u32 %s256, 1
          %s1213 = scalar_lea.sflag [#allocation4], %s1212
          %s1214 = sand.u32 %s256, 1
          %s1215 = smul.addr %s1214, 32
          %s1216 = scalar_lea.vmem [#allocation7], %s1215
          %1217 = dma.done %s1213, 512
        $region88: #{tpu_custom_call.1} parent=83 // pred_fallthru
          _
        // Predicated region
        $region89: #{tpu_custom_call.1} parent=83 // pred_check
          %p1218 = pneg %p297
        $region90: #{tpu_custom_call.1} parent=83 // pred_check_branch
          %1220 = sbr.rel (%p1218) target = $region92
        $region91: #{tpu_custom_call.1} parent=83 // pred_region
          %s1221 = sand.u32 %s33, 1
          %s1222 = scalar_lea.sflag [#allocation9], %s1221
          %s1223 = sand.u32 %s282, 1
          %s1224 = smul.addr %s1223, 32
          %s1225 = scalar_lea.vmem [#allocation8], %s1224
          %1226 = dma.done %s1222, 512
        $region92: #{tpu_custom_call.1} parent=83 // pred_fallthru
          _
        // Predicated region
        $region93: #{tpu_custom_call.1} parent=83 // pred_check
          %p1227 = pneg %p323
        $region94: #{tpu_custom_call.1} parent=83 // pred_check_branch
          %1229 = sbr.rel (%p1227) target = $region96
        $region95: #{tpu_custom_call.1} parent=83 // pred_region
          %s1230 = sand.u32 %s33, 1
          %s1231 = scalar_lea.sflag [#allocation9], %s1230
          %s1232 = sand.u32 %s308, 1
          %s1233 = smul.addr %s1232, 32
          %s1234 = scalar_lea.vmem [#allocation10], %s1233
          %1235 = dma.done %s1231, 512
        $region96: #{tpu_custom_call.1} parent=83 // pred_fallthru
          _
      $region84: #{tpu_custom_call.1} parent=5 // pred_fallthru
        _
    $region6: #{tpu_custom_call.1} parent=1 // loop_footer
      %s31 = sadd.s32 1, %s27
    $region7: #{tpu_custom_call.1} parent=1 // loop_footer_branch
      %26 = sbr.rel target = $region3
    $region8: #{tpu_custom_call.1} parent=1 // loop_exit
      _
    %1236 = vsyncpa [#allocation3], 1
    %s1237 = scalar_lea.sflag [#allocation3], 1
    %1238 = vsyncpa %s1237, 1
    %1239 = vsyncpa [#allocation6], 1
    %1240 = vsyncpa [#allocation4], 1
    %s1241 = scalar_lea.sflag [#allocation4], 1
    %1242 = vsyncpa %s1241, 1
    %1243 = vsyncpa [#allocation9], 1
    %s1244 = scalar_lea.sflag [#allocation9], 1
    %1245 = vsyncpa %s1244, 1

</llo_original>
